<compile_context>
chip_gen: v5e
topology: v5e:2x2
jax: 0.10.0
libtpu: 0.0.40
codegen_flags: <defaults>
</compile_context>

<pallas_src>
import jax
import jax.numpy as jnp
from jax.experimental import pallas as pl
from jax.experimental.pallas import tpu as pltpu

_EPS = 1e-5  # PyTorch InstanceNorm2d default eps (affine=False, no running stats)


def _round_up(v, m):
    return (v + m - 1) // m * m


# ----------------------------- Pallas kernel ------------------------------- #

def _make_kernel(C, H, W, OFF, WIN):
    Hp, Wp = H + 2, W + 2
    inv_cnt = 1.0 / float(H * W)

    def kernel(xp_ref, w1_ref, w2_ref, mask_ref, o_ref, h1_scr):
        # xp_ref  : (C, PbE)  reflection-padded x, flattened, data at lane OFF
        # w*_ref  : (9, C, C) tap-major conv weights (t = dy*3 + dx)
        # mask_ref: (8, WIN)  f32 rows {valid, left, right, top, bottom, 0, 0, 0}
        # o_ref   : (C, WIN)  padded-flat output (valid pixels at interior positions)
        # h1_scr  : (C, PbE)  VMEM scratch: reflection-padded intermediate h1

        validb = mask_ref[0:1, :] > 0.5
        sel_l = mask_ref[1:2, :] > 0.5
        sel_r = mask_ref[2:3, :] > 0.5
        sel_t = mask_ref[3:4, :] > 0.5
        sel_b = mask_ref[4:5, :] > 0.5

        def conv3x3(read, w_ref):
            # out[:, p] = sum_t  W_t @ src[:, p + (dy-1)*Wp + (dx-1)]   (f32 acc)
            acc = jnp.zeros((C, WIN), jnp.float32)
            for t in range(9):
                dy, dx = divmod(t, 3)
                s = (dy - 1) * Wp + (dx - 1)
                acc = acc + jnp.dot(w_ref[t], read(s),
                                    preferred_element_type=jnp.float32)
            return acc

        def inorm(a):
            # InstanceNorm2d(affine=False): stats over the H*W valid pixels only.
            mean = jnp.sum(jnp.where(validb, a, 0.0), axis=-1,
                           keepdims=True) * inv_cnt
            cen = a - mean
            var = jnp.sum(jnp.where(validb, cen * cen, 0.0), axis=-1,
                          keepdims=True) * inv_cnt
            return cen * jax.lax.rsqrt(var + _EPS)

        # ---------------- stage 1: conv + InstanceNorm + ReLU ---------------- #
        a1 = conv3x3(lambda s: xp_ref[:, pl.ds(OFF + s, WIN)], w1_ref)
        h1 = jnp.maximum(inorm(a1), 0.0).astype(h1_scr.dtype)

        # ------- rebuild reflection padding of h1 in the VMEM scratch -------- #
        h1_scr[...] = jnp.zeros(h1_scr.shape, h1_scr.dtype)
        h1_scr[:, pl.ds(OFF, WIN)] = h1
        # border columns: w_p==0 <- w_p==2, w_p==Wp-1 <- w_p==Wp-3
        colfix = jnp.where(sel_l, h1_scr[:, pl.ds(OFF + 2, WIN)], h1)
        colfix = jnp.where(sel_r, h1_scr[:, pl.ds(OFF - 2, WIN)], colfix)
        h1_scr[:, pl.ds(OFF, WIN)] = colfix
        # border rows: h_p==0 <- h_p==2, h_p==Hp-1 <- h_p==Hp-3 (after columns,
        # so corners match torch ReflectionPad2d exactly)
        rowfix = jnp.where(sel_t, h1_scr[:, pl.ds(OFF + 2 * Wp, WIN)], colfix)
        rowfix = jnp.where(sel_b, h1_scr[:, pl.ds(OFF - 2 * Wp, WIN)], rowfix)
        h1_scr[:, pl.ds(OFF, WIN)] = rowfix

        # ------------- stage 2: conv + InstanceNorm + residual --------------- #
        a2 = conv3x3(lambda s: h1_scr[:, pl.ds(OFF + s, WIN)], w2_ref)
        y = inorm(a2) + xp_ref[:, pl.ds(OFF, WIN)].astype(jnp.float32)
        o_ref[...] = y.astype(o_ref.dtype)

    return kernel


# ------------------------------ wrapper glue ------------------------------- #

def residule_block_forward(x, w1, b1, w2, b2, *, compute_dtype=jnp.float32):
    """Forward pass of Residule_block (NCHW).  b1/b2 are accepted for parity with
    the PyTorch module but are unused: InstanceNorm2d(affine=False) cancels any
    per-channel constant bias exactly."""
    del b1, b2
    n, c, h, w = x.shape
    hp, wp = h + 2, w + 2
    p = hp * wp
    win = _round_up(p, 128)                    # lane-dense working window
    off = _round_up(2 * wp, 64)                # head room for negative tap offsets
    pbe = _round_up(off + 2 * wp + win, 128)   # extended width of padded-flat bufs

    # Reflection-pad + flatten x once (~1.3x bytes instead of the old 9x im2col).
    xpad = jnp.pad(x, ((0, 0), (0, 0), (1, 1), (1, 1)), mode="reflect")
    xpad = xpad.reshape(n, c, p).astype(compute_dtype)
    xp_ext = jnp.zeros((n, c, pbe), compute_dtype).at[:, :, off:off + p].set(xpad)

    # Tap-major weights: (9, Cout, Cin), t = dy*3 + dx.
    w1_t = jnp.transpose(w1, (2, 3, 0, 1)).reshape(9, c, c).astype(compute_dtype)
    w2_t = jnp.transpose(w2, (2, 3, 0, 1)).reshape(9, c, c).astype(compute_dtype)

    # Region masks over the padded-flat window.
    j = jnp.arange(win)
    hp_i, wp_i = j // wp, j % wp
    in_grid = j < p
    zeros = jnp.zeros_like(in_grid)
    masks = jnp.stack([
        in_grid & (hp_i >= 1) & (hp_i <= h) & (wp_i >= 1) & (wp_i <= w),  # valid
        in_grid & (wp_i == 0),                                            # left
        in_grid & (wp_i == wp - 1),                                       # right
        hp_i == 0,                                                        # top
        in_grid & (hp_i == hp - 1),                                       # bottom
        zeros, zeros, zeros,
    ]).astype(jnp.float32)                                                # (8, win)

    out_flat = pl.pallas_call(
        _make_kernel(c, h, w, off, win),
        out_shape=jax.ShapeDtypeStruct((n, c, win), x.dtype),
        grid_spec=pltpu.PrefetchScalarGridSpec(
            num_scalar_prefetch=0,
            grid=(n,),
            in_specs=[
                pl.BlockSpec((pl.Squeezed(), c, pbe), lambda i: (i, 0, 0)),
                pl.BlockSpec((9, c, c), lambda i: (0, 0, 0)),
                pl.BlockSpec((9, c, c), lambda i: (0, 0, 0)),
                pl.BlockSpec((8, win), lambda i: (0, 0)),
            ],
            out_specs=pl.BlockSpec((pl.Squeezed(), c, win), lambda i: (i, 0, 0)),
            scratch_shapes=[pltpu.VMEM((c, pbe), compute_dtype)],
        ),
        compiler_params=pltpu.CompilerParams(
            dimension_semantics=("parallel",),
            vmem_limit_bytes=64 * 1024 * 1024,
        ),
    )(xp_ext, w1_t, w2_t, masks)

    # Valid output pixels live at the interior positions of the padded grid.
    y = out_flat[:, :, :p].reshape(n, c, hp, wp)[:, :, 1:h + 1, 1:w + 1]
    return y.astype(x.dtype)


# ------------------------------ pure-JAX ref ------------------------------- #

def _reference(x, w1, b1, w2, b2):
    def conv3x3_reflect(t, wt, b):
        tp = jnp.pad(t, ((0, 0), (0, 0), (1, 1), (1, 1)), mode="reflect")
        y = jax.lax.conv_general_dilated(
            tp, wt, window_strides=(1, 1), padding="VALID",
            dimension_numbers=("NCHW", "OIHW", "NCHW"),
            precision=jax.lax.Precision.HIGHEST)
        return y + b.reshape(1, -1, 1, 1)

    def inorm(t):
        m = jnp.mean(t, axis=(2, 3), keepdims=True)
        v = jnp.mean((t - m) ** 2, axis=(2, 3), keepdims=True)
        return (t - m) * jax.lax.rsqrt(v + _EPS)

    hmid = jax.nn.relu(inorm(conv3x3_reflect(x, w1, b1)))
    return inorm(conv3x3_reflect(hmid, w2, b2)) + x


# ---------------------------------- main ----------------------------------- #

if __name__ == "__main__":
    key = jax.random.PRNGKey(0)
    kx, kw1, kb1, kw2, kb2 = jax.random.split(key, 5)

    N, C, H, W = 2, 4, 16, 16          # in_dim = out_dim = 4
    x = jax.random.normal(kx, (N, C, H, W), dtype=jnp.float32)
    w1 = jax.random.normal(kw1, (C, C, 3, 3), dtype=jnp.float32) * 0.2
    b1 = jax.random.normal(kb1, (C,), dtype=jnp.float32) * 0.1
    w2 = jax.random.normal(kw2, (C, C, 3, 3), dtype=jnp.float32) * 0.2
    b2 = jax.random.normal(kb2, (C,), dtype=jnp.float32) * 0.1

    y_ref = _reference(x, w1, b1, w2, b2)

    # f32 MXU operands: tight check vs the HIGHEST-precision reference (which keeps
    # the conv biases -> also verifies that dropping them in-kernel is exact).
    y = jax.block_until_ready(residule_block_forward(x, w1, b1, w2, b2))
    assert y.shape == x.shape, y.shape
    assert y.dtype == x.dtype, y.dtype
    max_err = float(jnp.max(jnp.abs(y - y_ref)))
    assert bool(jnp.allclose(y, y_ref, rtol=1e-2, atol=1e-2)), max_err

    # bf16 MXU operands (production fast path on v6e/v7x): loose sanity check.
    y_bf16 = jax.block_until_ready(
        residule_block_forward(x, w1, b1, w2, b2, compute_dtype=jnp.bfloat16))
    max_err_bf16 = float(jnp.max(jnp.abs(y_bf16 - y_ref)))
    assert max_err_bf16 < 0.2, max_err_bf16

    print("KERNEL_OK")
</pallas_src>

<mosaic_0001>
module attributes {stable_mosaic.version = 11 : i64} {
  func.func @kernel(%arg0: i32, %arg1: memref<1x4x512xf32, #tpu.memory_space<vmem>>, %arg2: memref<9x4x4xf32, #tpu.memory_space<vmem>>, %arg3: memref<9x4x4xf32, #tpu.memory_space<vmem>>, %arg4: memref<8x384xf32, #tpu.memory_space<vmem>>, %arg5: memref<1x4x384xf32, #tpu.memory_space<vmem>>, %arg6: memref<4x512xf32, #tpu.memory_space<vmem>>) attributes {dimension_semantics = [#tpu.dimension_semantics<parallel>], iteration_bounds = array<i64: 2>, scalar_prefetch = 0 : i64, scratch_operands = 1 : i64, tpu.core_type = #tpu.core_type<tc>, window_params = [{transform_indices = @transform_0, window_bounds = array<i64: 1, 4, 512>}, {pipeline_mode = #tpu.pipeline_mode<synchronous>, transform_indices = @transform_1, window_bounds = array<i64: 9, 4, 4>}, {pipeline_mode = #tpu.pipeline_mode<synchronous>, transform_indices = @transform_2, window_bounds = array<i64: 9, 4, 4>}, {pipeline_mode = #tpu.pipeline_mode<synchronous>, transform_indices = @transform_3, window_bounds = array<i64: 8, 384>}, {transform_indices = @transform_4, window_bounds = array<i64: 1, 4, 384>}]} {
    %c0 = arith.constant 0 : index
    %c0_0 = arith.constant 0 : index
    %0 = vector.load %arg4[%c0, %c0_0] : memref<8x384xf32, #tpu.memory_space<vmem>>, vector<1x384xf32>
    %cst = arith.constant 5.000000e-01 : f32
    %1 = vector.broadcast %cst : f32 to vector<1x384xf32>
    %2 = arith.cmpf ogt, %0, %1 : vector<1x384xf32>
    %c1 = arith.constant 1 : index
    %c0_1 = arith.constant 0 : index
    %3 = vector.load %arg4[%c1, %c0_1] : memref<8x384xf32, #tpu.memory_space<vmem>>, vector<1x384xf32>
    %cst_2 = arith.constant 5.000000e-01 : f32
    %4 = vector.broadcast %cst_2 : f32 to vector<1x384xf32>
    %5 = arith.cmpf ogt, %3, %4 : vector<1x384xf32>
    %c2 = arith.constant 2 : index
    %c0_3 = arith.constant 0 : index
    %6 = vector.load %arg4[%c2, %c0_3] : memref<8x384xf32, #tpu.memory_space<vmem>>, vector<1x384xf32>
    %cst_4 = arith.constant 5.000000e-01 : f32
    %7 = vector.broadcast %cst_4 : f32 to vector<1x384xf32>
    %8 = arith.cmpf ogt, %6, %7 : vector<1x384xf32>
    %c3 = arith.constant 3 : index
    %c0_5 = arith.constant 0 : index
    %9 = vector.load %arg4[%c3, %c0_5] : memref<8x384xf32, #tpu.memory_space<vmem>>, vector<1x384xf32>
    %cst_6 = arith.constant 5.000000e-01 : f32
    %10 = vector.broadcast %cst_6 : f32 to vector<1x384xf32>
    %11 = arith.cmpf ogt, %9, %10 : vector<1x384xf32>
    %c4 = arith.constant 4 : index
    %c0_7 = arith.constant 0 : index
    %12 = vector.load %arg4[%c4, %c0_7] : memref<8x384xf32, #tpu.memory_space<vmem>>, vector<1x384xf32>
    %cst_8 = arith.constant 5.000000e-01 : f32
    %13 = vector.broadcast %cst_8 : f32 to vector<1x384xf32>
    %14 = arith.cmpf ogt, %12, %13 : vector<1x384xf32>
    %cst_9 = arith.constant 0.000000e+00 : f32
    %15 = vector.broadcast %cst_9 : f32 to vector<4x384xf32>
    %c0_10 = arith.constant 0 : index
    %c0_11 = arith.constant 0 : index
    %c0_12 = arith.constant 0 : index
    %16 = vector.load %arg2[%c0_10, %c0_11, %c0_12] : memref<9x4x4xf32, #tpu.memory_space<vmem>>, vector<1x4x4xf32>
    %17 = vector.shape_cast %16 : vector<1x4x4xf32> to vector<4x4xf32>
    %c0_13 = arith.constant 0 : index
    %c0_14 = arith.constant 0 : index
    %c45 = arith.constant 45 : index
    %18 = vector.load %arg1[%c0_13, %c0_14, %c45] : memref<1x4x512xf32, #tpu.memory_space<vmem>>, vector<1x4x384xf32>
    %19 = vector.shape_cast %18 : vector<1x4x384xf32> to vector<4x384xf32>
    %cst_15 = arith.constant dense<0.000000e+00> : vector<4x384xf32>
    %20 = tpu.matmul %17, %19, %cst_15 {dimension_numbers = #tpu.dot_dimension_numbers<[1], [0], [0], [1], [0, 0, 1, 1], [], []>} : vector<4x4xf32>, vector<4x384xf32>, vector<4x384xf32> -> vector<4x384xf32>
    %21 = arith.addf %15, %20 : vector<4x384xf32>
    %c1_16 = arith.constant 1 : index
    %c0_17 = arith.constant 0 : index
    %c0_18 = arith.constant 0 : index
    %22 = vector.load %arg2[%c1_16, %c0_17, %c0_18] : memref<9x4x4xf32, #tpu.memory_space<vmem>>, vector<1x4x4xf32>
    %23 = vector.shape_cast %22 : vector<1x4x4xf32> to vector<4x4xf32>
    %c0_19 = arith.constant 0 : index
    %c0_20 = arith.constant 0 : index
    %c46 = arith.constant 46 : index
    %24 = vector.load %arg1[%c0_19, %c0_20, %c46] : memref<1x4x512xf32, #tpu.memory_space<vmem>>, vector<1x4x384xf32>
    %25 = vector.shape_cast %24 : vector<1x4x384xf32> to vector<4x384xf32>
    %cst_21 = arith.constant dense<0.000000e+00> : vector<4x384xf32>
    %26 = tpu.matmul %23, %25, %cst_21 {dimension_numbers = #tpu.dot_dimension_numbers<[1], [0], [0], [1], [0, 0, 1, 1], [], []>} : vector<4x4xf32>, vector<4x384xf32>, vector<4x384xf32> -> vector<4x384xf32>
    %27 = arith.addf %21, %26 : vector<4x384xf32>
    %c2_22 = arith.constant 2 : index
    %c0_23 = arith.constant 0 : index
    %c0_24 = arith.constant 0 : index
    %28 = vector.load %arg2[%c2_22, %c0_23, %c0_24] : memref<9x4x4xf32, #tpu.memory_space<vmem>>, vector<1x4x4xf32>
    %29 = vector.shape_cast %28 : vector<1x4x4xf32> to vector<4x4xf32>
    %c0_25 = arith.constant 0 : index
    %c0_26 = arith.constant 0 : index
    %c47 = arith.constant 47 : index
    %30 = vector.load %arg1[%c0_25, %c0_26, %c47] : memref<1x4x512xf32, #tpu.memory_space<vmem>>, vector<1x4x384xf32>
    %31 = vector.shape_cast %30 : vector<1x4x384xf32> to vector<4x384xf32>
    %cst_27 = arith.constant dense<0.000000e+00> : vector<4x384xf32>
    %32 = tpu.matmul %29, %31, %cst_27 {dimension_numbers = #tpu.dot_dimension_numbers<[1], [0], [0], [1], [0, 0, 1, 1], [], []>} : vector<4x4xf32>, vector<4x384xf32>, vector<4x384xf32> -> vector<4x384xf32>
    %33 = arith.addf %27, %32 : vector<4x384xf32>
    %c3_28 = arith.constant 3 : index
    %c0_29 = arith.constant 0 : index
    %c0_30 = arith.constant 0 : index
    %34 = vector.load %arg2[%c3_28, %c0_29, %c0_30] : memref<9x4x4xf32, #tpu.memory_space<vmem>>, vector<1x4x4xf32>
    %35 = vector.shape_cast %34 : vector<1x4x4xf32> to vector<4x4xf32>
    %c0_31 = arith.constant 0 : index
    %c0_32 = arith.constant 0 : index
    %c63 = arith.constant 63 : index
    %36 = vector.load %arg1[%c0_31, %c0_32, %c63] : memref<1x4x512xf32, #tpu.memory_space<vmem>>, vector<1x4x384xf32>
    %37 = vector.shape_cast %36 : vector<1x4x384xf32> to vector<4x384xf32>
    %cst_33 = arith.constant dense<0.000000e+00> : vector<4x384xf32>
    %38 = tpu.matmul %35, %37, %cst_33 {dimension_numbers = #tpu.dot_dimension_numbers<[1], [0], [0], [1], [0, 0, 1, 1], [], []>} : vector<4x4xf32>, vector<4x384xf32>, vector<4x384xf32> -> vector<4x384xf32>
    %39 = arith.addf %33, %38 : vector<4x384xf32>
    %c4_34 = arith.constant 4 : index
    %c0_35 = arith.constant 0 : index
    %c0_36 = arith.constant 0 : index
    %40 = vector.load %arg2[%c4_34, %c0_35, %c0_36] : memref<9x4x4xf32, #tpu.memory_space<vmem>>, vector<1x4x4xf32>
    %41 = vector.shape_cast %40 : vector<1x4x4xf32> to vector<4x4xf32>
    %c0_37 = arith.constant 0 : index
    %c0_38 = arith.constant 0 : index
    %c64 = arith.constant 64 : index
    %42 = vector.load %arg1[%c0_37, %c0_38, %c64] : memref<1x4x512xf32, #tpu.memory_space<vmem>>, vector<1x4x384xf32>
    %43 = vector.shape_cast %42 : vector<1x4x384xf32> to vector<4x384xf32>
    %cst_39 = arith.constant dense<0.000000e+00> : vector<4x384xf32>
    %44 = tpu.matmul %41, %43, %cst_39 {dimension_numbers = #tpu.dot_dimension_numbers<[1], [0], [0], [1], [0, 0, 1, 1], [], []>} : vector<4x4xf32>, vector<4x384xf32>, vector<4x384xf32> -> vector<4x384xf32>
    %45 = arith.addf %39, %44 : vector<4x384xf32>
    %c5 = arith.constant 5 : index
    %c0_40 = arith.constant 0 : index
    %c0_41 = arith.constant 0 : index
    %46 = vector.load %arg2[%c5, %c0_40, %c0_41] : memref<9x4x4xf32, #tpu.memory_space<vmem>>, vector<1x4x4xf32>
    %47 = vector.shape_cast %46 : vector<1x4x4xf32> to vector<4x4xf32>
    %c0_42 = arith.constant 0 : index
    %c0_43 = arith.constant 0 : index
    %c65 = arith.constant 65 : index
    %48 = vector.load %arg1[%c0_42, %c0_43, %c65] : memref<1x4x512xf32, #tpu.memory_space<vmem>>, vector<1x4x384xf32>
    %49 = vector.shape_cast %48 : vector<1x4x384xf32> to vector<4x384xf32>
    %cst_44 = arith.constant dense<0.000000e+00> : vector<4x384xf32>
    %50 = tpu.matmul %47, %49, %cst_44 {dimension_numbers = #tpu.dot_dimension_numbers<[1], [0], [0], [1], [0, 0, 1, 1], [], []>} : vector<4x4xf32>, vector<4x384xf32>, vector<4x384xf32> -> vector<4x384xf32>
    %51 = arith.addf %45, %50 : vector<4x384xf32>
    %c6 = arith.constant 6 : index
    %c0_45 = arith.constant 0 : index
    %c0_46 = arith.constant 0 : index
    %52 = vector.load %arg2[%c6, %c0_45, %c0_46] : memref<9x4x4xf32, #tpu.memory_space<vmem>>, vector<1x4x4xf32>
    %53 = vector.shape_cast %52 : vector<1x4x4xf32> to vector<4x4xf32>
    %c0_47 = arith.constant 0 : index
    %c0_48 = arith.constant 0 : index
    %c81 = arith.constant 81 : index
    %54 = vector.load %arg1[%c0_47, %c0_48, %c81] : memref<1x4x512xf32, #tpu.memory_space<vmem>>, vector<1x4x384xf32>
    %55 = vector.shape_cast %54 : vector<1x4x384xf32> to vector<4x384xf32>
    %cst_49 = arith.constant dense<0.000000e+00> : vector<4x384xf32>
    %56 = tpu.matmul %53, %55, %cst_49 {dimension_numbers = #tpu.dot_dimension_numbers<[1], [0], [0], [1], [0, 0, 1, 1], [], []>} : vector<4x4xf32>, vector<4x384xf32>, vector<4x384xf32> -> vector<4x384xf32>
    %57 = arith.addf %51, %56 : vector<4x384xf32>
    %c7 = arith.constant 7 : index
    %c0_50 = arith.constant 0 : index
    %c0_51 = arith.constant 0 : index
    %58 = vector.load %arg2[%c7, %c0_50, %c0_51] : memref<9x4x4xf32, #tpu.memory_space<vmem>>, vector<1x4x4xf32>
    %59 = vector.shape_cast %58 : vector<1x4x4xf32> to vector<4x4xf32>
    %c0_52 = arith.constant 0 : index
    %c0_53 = arith.constant 0 : index
    %c82 = arith.constant 82 : index
    %60 = vector.load %arg1[%c0_52, %c0_53, %c82] : memref<1x4x512xf32, #tpu.memory_space<vmem>>, vector<1x4x384xf32>
    %61 = vector.shape_cast %60 : vector<1x4x384xf32> to vector<4x384xf32>
    %cst_54 = arith.constant dense<0.000000e+00> : vector<4x384xf32>
    %62 = tpu.matmul %59, %61, %cst_54 {dimension_numbers = #tpu.dot_dimension_numbers<[1], [0], [0], [1], [0, 0, 1, 1], [], []>} : vector<4x4xf32>, vector<4x384xf32>, vector<4x384xf32> -> vector<4x384xf32>
    %63 = arith.addf %57, %62 : vector<4x384xf32>
    %c8 = arith.constant 8 : index
    %c0_55 = arith.constant 0 : index
    %c0_56 = arith.constant 0 : index
    %64 = vector.load %arg2[%c8, %c0_55, %c0_56] : memref<9x4x4xf32, #tpu.memory_space<vmem>>, vector<1x4x4xf32>
    %65 = vector.shape_cast %64 : vector<1x4x4xf32> to vector<4x4xf32>
    %c0_57 = arith.constant 0 : index
    %c0_58 = arith.constant 0 : index
    %c83 = arith.constant 83 : index
    %66 = vector.load %arg1[%c0_57, %c0_58, %c83] : memref<1x4x512xf32, #tpu.memory_space<vmem>>, vector<1x4x384xf32>
    %67 = vector.shape_cast %66 : vector<1x4x384xf32> to vector<4x384xf32>
    %cst_59 = arith.constant dense<0.000000e+00> : vector<4x384xf32>
    %68 = tpu.matmul %65, %67, %cst_59 {dimension_numbers = #tpu.dot_dimension_numbers<[1], [0], [0], [1], [0, 0, 1, 1], [], []>} : vector<4x4xf32>, vector<4x384xf32>, vector<4x384xf32> -> vector<4x384xf32>
    %69 = arith.addf %63, %68 : vector<4x384xf32>
    %cst_60 = arith.constant 0.000000e+00 : f32
    %70 = vector.shape_cast %2 : vector<1x384xi1> to vector<1x384xi1>
    %71 = vector.broadcast %70 : vector<1x384xi1> to vector<4x384xi1>
    %72 = vector.broadcast %cst_60 : f32 to vector<4x384xf32>
    %73 = arith.select %71, %69, %72 : vector<4x384xi1>, vector<4x384xf32>
    %cst_61 = arith.constant dense<0.000000e+00> : vector<4xf32>
    %74 = vector.multi_reduction <add>, %73, %cst_61 [1] : vector<4x384xf32> to vector<4xf32>
    %75 = vector.shape_cast %74 : vector<4xf32> to vector<4x1xf32>
    %cst_62 = arith.constant 3.906250e-03 : f32
    %76 = vector.broadcast %cst_62 : f32 to vector<4x1xf32>
    %77 = arith.mulf %75, %76 : vector<4x1xf32>
    %78 = vector.broadcast %77 : vector<4x1xf32> to vector<4x384xf32>
    %79 = arith.subf %69, %78 : vector<4x384xf32>
    %80 = arith.mulf %79, %79 : vector<4x384xf32>
    %cst_63 = arith.constant 0.000000e+00 : f32
    %81 = vector.shape_cast %2 : vector<1x384xi1> to vector<1x384xi1>
    %82 = vector.broadcast %81 : vector<1x384xi1> to vector<4x384xi1>
    %83 = vector.broadcast %cst_63 : f32 to vector<4x384xf32>
    %84 = arith.select %82, %80, %83 : vector<4x384xi1>, vector<4x384xf32>
    %cst_64 = arith.constant dense<0.000000e+00> : vector<4xf32>
    %85 = vector.multi_reduction <add>, %84, %cst_64 [1] : vector<4x384xf32> to vector<4xf32>
    %86 = vector.shape_cast %85 : vector<4xf32> to vector<4x1xf32>
    %cst_65 = arith.constant 3.906250e-03 : f32
    %87 = vector.broadcast %cst_65 : f32 to vector<4x1xf32>
    %88 = arith.mulf %86, %87 : vector<4x1xf32>
    %cst_66 = arith.constant 9.99999974E-6 : f32
    %89 = vector.broadcast %cst_66 : f32 to vector<4x1xf32>
    %90 = arith.addf %88, %89 : vector<4x1xf32>
    %91 = math.rsqrt %90 : vector<4x1xf32>
    %92 = vector.broadcast %91 : vector<4x1xf32> to vector<4x384xf32>
    %93 = arith.mulf %79, %92 : vector<4x384xf32>
    %cst_67 = arith.constant 0.000000e+00 : f32
    %94 = vector.broadcast %cst_67 : f32 to vector<4x384xf32>
    %95 = arith.maximumf %93, %94 : vector<4x384xf32>
    %cst_68 = arith.constant 0.000000e+00 : f32
    %96 = vector.broadcast %cst_68 : f32 to vector<4x512xf32>
    %c0_69 = arith.constant 0 : index
    %c0_70 = arith.constant 0 : index
    %97 = vector.load %arg6[%c0_69, %c0_70] : memref<4x512xf32, #tpu.memory_space<vmem>>, vector<4x512xf32>
    tpu.vector_store %arg6[%c0_69, %c0_70], %96 {strides = array<i32>} : memref<4x512xf32, #tpu.memory_space<vmem>>, vector<4x512xf32>,
    %c0_71 = arith.constant 0 : index
    %c64_72 = arith.constant 64 : index
    %98 = vector.load %arg6[%c0_71, %c64_72] : memref<4x512xf32, #tpu.memory_space<vmem>>, vector<4x384xf32>
    tpu.vector_store %arg6[%c0_71, %c64_72], %95 {strides = array<i32>} : memref<4x512xf32, #tpu.memory_space<vmem>>, vector<4x384xf32>,
    %c0_73 = arith.constant 0 : index
    %c66 = arith.constant 66 : index
    %99 = vector.load %arg6[%c0_73, %c66] : memref<4x512xf32, #tpu.memory_space<vmem>>, vector<4x384xf32>
    %100 = vector.shape_cast %5 : vector<1x384xi1> to vector<1x384xi1>
    %101 = vector.broadcast %100 : vector<1x384xi1> to vector<4x384xi1>
    %102 = arith.select %101, %99, %95 : vector<4x384xi1>, vector<4x384xf32>
    %c0_74 = arith.constant 0 : index
    %c62 = arith.constant 62 : index
    %103 = vector.load %arg6[%c0_74, %c62] : memref<4x512xf32, #tpu.memory_space<vmem>>, vector<4x384xf32>
    %104 = vector.shape_cast %8 : vector<1x384xi1> to vector<1x384xi1>
    %105 = vector.broadcast %104 : vector<1x384xi1> to vector<4x384xi1>
    %106 = arith.select %105, %103, %102 : vector<4x384xi1>, vector<4x384xf32>
    %c0_75 = arith.constant 0 : index
    %c64_76 = arith.constant 64 : index
    %107 = vector.load %arg6[%c0_75, %c64_76] : memref<4x512xf32, #tpu.memory_space<vmem>>, vector<4x384xf32>
    tpu.vector_store %arg6[%c0_75, %c64_76], %106 {strides = array<i32>} : memref<4x512xf32, #tpu.memory_space<vmem>>, vector<4x384xf32>,
    %c0_77 = arith.constant 0 : index
    %c100 = arith.constant 100 : index
    %108 = vector.load %arg6[%c0_77, %c100] : memref<4x512xf32, #tpu.memory_space<vmem>>, vector<4x384xf32>
    %109 = vector.shape_cast %11 : vector<1x384xi1> to vector<1x384xi1>
    %110 = vector.broadcast %109 : vector<1x384xi1> to vector<4x384xi1>
    %111 = arith.select %110, %108, %106 : vector<4x384xi1>, vector<4x384xf32>
    %c0_78 = arith.constant 0 : index
    %c28 = arith.constant 28 : index
    %112 = vector.load %arg6[%c0_78, %c28] : memref<4x512xf32, #tpu.memory_space<vmem>>, vector<4x384xf32>
    %113 = vector.shape_cast %14 : vector<1x384xi1> to vector<1x384xi1>
    %114 = vector.broadcast %113 : vector<1x384xi1> to vector<4x384xi1>
    %115 = arith.select %114, %112, %111 : vector<4x384xi1>, vector<4x384xf32>
    %c0_79 = arith.constant 0 : index
    %c64_80 = arith.constant 64 : index
    %116 = vector.load %arg6[%c0_79, %c64_80] : memref<4x512xf32, #tpu.memory_space<vmem>>, vector<4x384xf32>
    tpu.vector_store %arg6[%c0_79, %c64_80], %115 {strides = array<i32>} : memref<4x512xf32, #tpu.memory_space<vmem>>, vector<4x384xf32>,
    %cst_81 = arith.constant 0.000000e+00 : f32
    %117 = vector.broadcast %cst_81 : f32 to vector<4x384xf32>
    %c0_82 = arith.constant 0 : index
    %c0_83 = arith.constant 0 : index
    %c0_84 = arith.constant 0 : index
    %118 = vector.load %arg3[%c0_82, %c0_83, %c0_84] : memref<9x4x4xf32, #tpu.memory_space<vmem>>, vector<1x4x4xf32>
    %119 = vector.shape_cast %118 : vector<1x4x4xf32> to vector<4x4xf32>
    %c0_85 = arith.constant 0 : index
    %c45_86 = arith.constant 45 : index
    %120 = vector.load %arg6[%c0_85, %c45_86] : memref<4x512xf32, #tpu.memory_space<vmem>>, vector<4x384xf32>
    %cst_87 = arith.constant dense<0.000000e+00> : vector<4x384xf32>
    %121 = tpu.matmul %119, %120, %cst_87 {dimension_numbers = #tpu.dot_dimension_numbers<[1], [0], [0], [1], [0, 0, 1, 1], [], []>} : vector<4x4xf32>, vector<4x384xf32>, vector<4x384xf32> -> vector<4x384xf32>
    %122 = arith.addf %117, %121 : vector<4x384xf32>
    %c1_88 = arith.constant 1 : index
    %c0_89 = arith.constant 0 : index
    %c0_90 = arith.constant 0 : index
    %123 = vector.load %arg3[%c1_88, %c0_89, %c0_90] : memref<9x4x4xf32, #tpu.memory_space<vmem>>, vector<1x4x4xf32>
    %124 = vector.shape_cast %123 : vector<1x4x4xf32> to vector<4x4xf32>
    %c0_91 = arith.constant 0 : index
    %c46_92 = arith.constant 46 : index
    %125 = vector.load %arg6[%c0_91, %c46_92] : memref<4x512xf32, #tpu.memory_space<vmem>>, vector<4x384xf32>
    %cst_93 = arith.constant dense<0.000000e+00> : vector<4x384xf32>
    %126 = tpu.matmul %124, %125, %cst_93 {dimension_numbers = #tpu.dot_dimension_numbers<[1], [0], [0], [1], [0, 0, 1, 1], [], []>} : vector<4x4xf32>, vector<4x384xf32>, vector<4x384xf32> -> vector<4x384xf32>
    %127 = arith.addf %122, %126 : vector<4x384xf32>
    %c2_94 = arith.constant 2 : index
    %c0_95 = arith.constant 0 : index
    %c0_96 = arith.constant 0 : index
    %128 = vector.load %arg3[%c2_94, %c0_95, %c0_96] : memref<9x4x4xf32, #tpu.memory_space<vmem>>, vector<1x4x4xf32>
    %129 = vector.shape_cast %128 : vector<1x4x4xf32> to vector<4x4xf32>
    %c0_97 = arith.constant 0 : index
    %c47_98 = arith.constant 47 : index
    %130 = vector.load %arg6[%c0_97, %c47_98] : memref<4x512xf32, #tpu.memory_space<vmem>>, vector<4x384xf32>
    %cst_99 = arith.constant dense<0.000000e+00> : vector<4x384xf32>
    %131 = tpu.matmul %129, %130, %cst_99 {dimension_numbers = #tpu.dot_dimension_numbers<[1], [0], [0], [1], [0, 0, 1, 1], [], []>} : vector<4x4xf32>, vector<4x384xf32>, vector<4x384xf32> -> vector<4x384xf32>
    %132 = arith.addf %127, %131 : vector<4x384xf32>
    %c3_100 = arith.constant 3 : index
    %c0_101 = arith.constant 0 : index
    %c0_102 = arith.constant 0 : index
    %133 = vector.load %arg3[%c3_100, %c0_101, %c0_102] : memref<9x4x4xf32, #tpu.memory_space<vmem>>, vector<1x4x4xf32>
    %134 = vector.shape_cast %133 : vector<1x4x4xf32> to vector<4x4xf32>
    %c0_103 = arith.constant 0 : index
    %c63_104 = arith.constant 63 : index
    %135 = vector.load %arg6[%c0_103, %c63_104] : memref<4x512xf32, #tpu.memory_space<vmem>>, vector<4x384xf32>
    %cst_105 = arith.constant dense<0.000000e+00> : vector<4x384xf32>
    %136 = tpu.matmul %134, %135, %cst_105 {dimension_numbers = #tpu.dot_dimension_numbers<[1], [0], [0], [1], [0, 0, 1, 1], [], []>} : vector<4x4xf32>, vector<4x384xf32>, vector<4x384xf32> -> vector<4x384xf32>
    %137 = arith.addf %132, %136 : vector<4x384xf32>
    %c4_106 = arith.constant 4 : index
    %c0_107 = arith.constant 0 : index
    %c0_108 = arith.constant 0 : index
    %138 = vector.load %arg3[%c4_106, %c0_107, %c0_108] : memref<9x4x4xf32, #tpu.memory_space<vmem>>, vector<1x4x4xf32>
    %139 = vector.shape_cast %138 : vector<1x4x4xf32> to vector<4x4xf32>
    %c0_109 = arith.constant 0 : index
    %c64_110 = arith.constant 64 : index
    %140 = vector.load %arg6[%c0_109, %c64_110] : memref<4x512xf32, #tpu.memory_space<vmem>>, vector<4x384xf32>
    %cst_111 = arith.constant dense<0.000000e+00> : vector<4x384xf32>
    %141 = tpu.matmul %139, %140, %cst_111 {dimension_numbers = #tpu.dot_dimension_numbers<[1], [0], [0], [1], [0, 0, 1, 1], [], []>} : vector<4x4xf32>, vector<4x384xf32>, vector<4x384xf32> -> vector<4x384xf32>
    %142 = arith.addf %137, %141 : vector<4x384xf32>
    %c5_112 = arith.constant 5 : index
    %c0_113 = arith.constant 0 : index
    %c0_114 = arith.constant 0 : index
    %143 = vector.load %arg3[%c5_112, %c0_113, %c0_114] : memref<9x4x4xf32, #tpu.memory_space<vmem>>, vector<1x4x4xf32>
    %144 = vector.shape_cast %143 : vector<1x4x4xf32> to vector<4x4xf32>
    %c0_115 = arith.constant 0 : index
    %c65_116 = arith.constant 65 : index
    %145 = vector.load %arg6[%c0_115, %c65_116] : memref<4x512xf32, #tpu.memory_space<vmem>>, vector<4x384xf32>
    %cst_117 = arith.constant dense<0.000000e+00> : vector<4x384xf32>
    %146 = tpu.matmul %144, %145, %cst_117 {dimension_numbers = #tpu.dot_dimension_numbers<[1], [0], [0], [1], [0, 0, 1, 1], [], []>} : vector<4x4xf32>, vector<4x384xf32>, vector<4x384xf32> -> vector<4x384xf32>
    %147 = arith.addf %142, %146 : vector<4x384xf32>
    %c6_118 = arith.constant 6 : index
    %c0_119 = arith.constant 0 : index
    %c0_120 = arith.constant 0 : index
    %148 = vector.load %arg3[%c6_118, %c0_119, %c0_120] : memref<9x4x4xf32, #tpu.memory_space<vmem>>, vector<1x4x4xf32>
    %149 = vector.shape_cast %148 : vector<1x4x4xf32> to vector<4x4xf32>
    %c0_121 = arith.constant 0 : index
    %c81_122 = arith.constant 81 : index
    %150 = vector.load %arg6[%c0_121, %c81_122] : memref<4x512xf32, #tpu.memory_space<vmem>>, vector<4x384xf32>
    %cst_123 = arith.constant dense<0.000000e+00> : vector<4x384xf32>
    %151 = tpu.matmul %149, %150, %cst_123 {dimension_numbers = #tpu.dot_dimension_numbers<[1], [0], [0], [1], [0, 0, 1, 1], [], []>} : vector<4x4xf32>, vector<4x384xf32>, vector<4x384xf32> -> vector<4x384xf32>
    %152 = arith.addf %147, %151 : vector<4x384xf32>
    %c7_124 = arith.constant 7 : index
    %c0_125 = arith.constant 0 : index
    %c0_126 = arith.constant 0 : index
    %153 = vector.load %arg3[%c7_124, %c0_125, %c0_126] : memref<9x4x4xf32, #tpu.memory_space<vmem>>, vector<1x4x4xf32>
    %154 = vector.shape_cast %153 : vector<1x4x4xf32> to vector<4x4xf32>
    %c0_127 = arith.constant 0 : index
    %c82_128 = arith.constant 82 : index
    %155 = vector.load %arg6[%c0_127, %c82_128] : memref<4x512xf32, #tpu.memory_space<vmem>>, vector<4x384xf32>
    %cst_129 = arith.constant dense<0.000000e+00> : vector<4x384xf32>
    %156 = tpu.matmul %154, %155, %cst_129 {dimension_numbers = #tpu.dot_dimension_numbers<[1], [0], [0], [1], [0, 0, 1, 1], [], []>} : vector<4x4xf32>, vector<4x384xf32>, vector<4x384xf32> -> vector<4x384xf32>
    %157 = arith.addf %152, %156 : vector<4x384xf32>
    %c8_130 = arith.constant 8 : index
    %c0_131 = arith.constant 0 : index
    %c0_132 = arith.constant 0 : index
    %158 = vector.load %arg3[%c8_130, %c0_131, %c0_132] : memref<9x4x4xf32, #tpu.memory_space<vmem>>, vector<1x4x4xf32>
    %159 = vector.shape_cast %158 : vector<1x4x4xf32> to vector<4x4xf32>
    %c0_133 = arith.constant 0 : index
    %c83_134 = arith.constant 83 : index
    %160 = vector.load %arg6[%c0_133, %c83_134] : memref<4x512xf32, #tpu.memory_space<vmem>>, vector<4x384xf32>
    %cst_135 = arith.constant dense<0.000000e+00> : vector<4x384xf32>
    %161 = tpu.matmul %159, %160, %cst_135 {dimension_numbers = #tpu.dot_dimension_numbers<[1], [0], [0], [1], [0, 0, 1, 1], [], []>} : vector<4x4xf32>, vector<4x384xf32>, vector<4x384xf32> -> vector<4x384xf32>
    %162 = arith.addf %157, %161 : vector<4x384xf32>
    %cst_136 = arith.constant 0.000000e+00 : f32
    %163 = vector.shape_cast %2 : vector<1x384xi1> to vector<1x384xi1>
    %164 = vector.broadcast %163 : vector<1x384xi1> to vector<4x384xi1>
    %165 = vector.broadcast %cst_136 : f32 to vector<4x384xf32>
    %166 = arith.select %164, %162, %165 : vector<4x384xi1>, vector<4x384xf32>
    %cst_137 = arith.constant dense<0.000000e+00> : vector<4xf32>
    %167 = vector.multi_reduction <add>, %166, %cst_137 [1] : vector<4x384xf32> to vector<4xf32>
    %168 = vector.shape_cast %167 : vector<4xf32> to vector<4x1xf32>
    %cst_138 = arith.constant 3.906250e-03 : f32
    %169 = vector.broadcast %cst_138 : f32 to vector<4x1xf32>
    %170 = arith.mulf %168, %169 : vector<4x1xf32>
    %171 = vector.broadcast %170 : vector<4x1xf32> to vector<4x384xf32>
    %172 = arith.subf %162, %171 : vector<4x384xf32>
    %173 = arith.mulf %172, %172 : vector<4x384xf32>
    %cst_139 = arith.constant 0.000000e+00 : f32
    %174 = vector.shape_cast %2 : vector<1x384xi1> to vector<1x384xi1>
    %175 = vector.broadcast %174 : vector<1x384xi1> to vector<4x384xi1>
    %176 = vector.broadcast %cst_139 : f32 to vector<4x384xf32>
    %177 = arith.select %175, %173, %176 : vector<4x384xi1>, vector<4x384xf32>
    %cst_140 = arith.constant dense<0.000000e+00> : vector<4xf32>
    %178 = vector.multi_reduction <add>, %177, %cst_140 [1] : vector<4x384xf32> to vector<4xf32>
    %179 = vector.shape_cast %178 : vector<4xf32> to vector<4x1xf32>
    %cst_141 = arith.constant 3.906250e-03 : f32
    %180 = vector.broadcast %cst_141 : f32 to vector<4x1xf32>
    %181 = arith.mulf %179, %180 : vector<4x1xf32>
    %cst_142 = arith.constant 9.99999974E-6 : f32
    %182 = vector.broadcast %cst_142 : f32 to vector<4x1xf32>
    %183 = arith.addf %181, %182 : vector<4x1xf32>
    %184 = math.rsqrt %183 : vector<4x1xf32>
    %185 = vector.broadcast %184 : vector<4x1xf32> to vector<4x384xf32>
    %186 = arith.mulf %172, %185 : vector<4x384xf32>
    %c0_143 = arith.constant 0 : index
    %c0_144 = arith.constant 0 : index
    %c64_145 = arith.constant 64 : index
    %187 = vector.load %arg1[%c0_143, %c0_144, %c64_145] : memref<1x4x512xf32, #tpu.memory_space<vmem>>, vector<1x4x384xf32>
    %188 = vector.shape_cast %187 : vector<1x4x384xf32> to vector<4x384xf32>
    %189 = arith.addf %186, %188 : vector<4x384xf32>
    %c0_146 = arith.constant 0 : index
    %c0_147 = arith.constant 0 : index
    %c0_148 = arith.constant 0 : index
    %190 = vector.load %arg5[%c0_146, %c0_147, %c0_148] : memref<1x4x384xf32, #tpu.memory_space<vmem>>, vector<1x4x384xf32>
    %191 = vector.shape_cast %190 : vector<1x4x384xf32> to vector<4x384xf32>
    %192 = vector.shape_cast %189 : vector<4x384xf32> to vector<1x4x384xf32>
    tpu.vector_store %arg5[%c0_146, %c0_147, %c0_148], %192 {strides = array<i32>} : memref<1x4x384xf32, #tpu.memory_space<vmem>>, vector<1x4x384xf32>,
    return
  }
  func.func @transform_0(%arg0: i32) -> (i32, i32, i32) {
    %c0_i32 = arith.constant 0 : i32
    %c0_i32_0 = arith.constant 0 : i32
    %c0_i32_1 = arith.constant 0 : i32
    return %arg0, %c0_i32, %c0_i32_0 : i32, i32, i32
  }
  func.func @transform_1(%arg0: i32) -> (i32, i32, i32) {
    %c0_i32 = arith.constant 0 : i32
    %c0_i32_0 = arith.constant 0 : i32
    %c0_i32_1 = arith.constant 0 : i32
    %c0_i32_2 = arith.constant 0 : i32
    return %c0_i32, %c0_i32_0, %c0_i32_1 : i32, i32, i32
  }
  func.func @transform_2(%arg0: i32) -> (i32, i32, i32) {
    %c0_i32 = arith.constant 0 : i32
    %c0_i32_0 = arith.constant 0 : i32
    %c0_i32_1 = arith.constant 0 : i32
    %c0_i32_2 = arith.constant 0 : i32
    return %c0_i32, %c0_i32_0, %c0_i32_1 : i32, i32, i32
  }
  func.func @transform_3(%arg0: i32) -> (i32, i32) {
    %c0_i32 = arith.constant 0 : i32
    %c0_i32_0 = arith.constant 0 : i32
    %c0_i32_1 = arith.constant 0 : i32
    return %c0_i32, %c0_i32_0 : i32, i32
  }
  func.func @transform_4(%arg0: i32) -> (i32, i32, i32) {
    %c0_i32 = arith.constant 0 : i32
    %c0_i32_0 = arith.constant 0 : i32
    %c0_i32_1 = arith.constant 0 : i32
    return %arg0, %c0_i32, %c0_i32_0 : i32, i32, i32
  }
}

</mosaic_0001>

<llo_original>
// kernel: tpu_custom_call.1
$region0: #{tpu_custom_call.1}
  #allocation0 [shape = 'u32[]', space=smem, size = 0x4, offset = 0x4, fixed_abs, tag = 'smem constant byte address 0x4 - core index']
  #allocation1 [shape = 'u32[72,128]{1,0:T(1,128)}', space=vmem, size = 0x9000, scoped, tag = 'internal scratch']
  #allocation2 [shape = 'f32[4,512]{1,0:T(4,128)}', space=vmem, size = 0x2000, scoped, tag = 'scratch operand']
  %s0 = inlined_call_operand.vmem [shape: f32[2,4,512], index: 0, kind: input, shape index: {}]
  %s1 = inlined_call_operand.vmem [shape: f32[9,4,4], index: 1, kind: input, shape index: {}]
  %s2 = inlined_call_operand.vmem [shape: f32[9,4,4], index: 2, kind: input, shape index: {}]
  %s3 = inlined_call_operand.vmem [shape: f32[8,384], index: 3, kind: input, shape index: {}]
  %s4 = inlined_call_operand.hbm [shape: f32[2,4,384], index: 4, kind: output, shape index: {}]
  %s5 = sld [smem:[#allocation0]]
  $region49: #{tpu_custom_call.1} parent=0
    _
  %s7 = ssub.s32 1, %s5
  %s8 = scalar_select 0, %s7, %s5
  $region1: #{tpu_custom_call.1} parent=0
    #allocation3 [shape = 'u8[12288]{0}', space=vmem, size = 0x3000, scoped, tag = 'output window, operand 0']
    #allocation4 [shape = 's32[2]{0}', space=sflag, size = 0x8, scoped, tag = 'scoped memory for tpu_custom_call.1']
    %9 = vsyncpa [#allocation4], 0
    %s10 = scalar_lea.sflag [#allocation4], 1
    %11 = vsyncpa %s10, 0
    loop: start=0, step=1, limit=4
    $region2: #{tpu_custom_call.1} parent=1 // loop_pre_header
      _
    $region3: #{tpu_custom_call.1} parent=1 // loop_header
      %s13 = sphi 0, %s17
      %p14 = scmp.ge.s32.totalorder %s13, 4
      %s23 = sphi 0, %s25
      %s26 = sphi 0, %s23
      %s27 = sphi 0, %s26
      %s43 = sphi 0, %s27
      %s47 = sphi 0, %s47
      %s49 = sphi 0, %s47
      %s50 = sphi 0, %s49
      %s64 = sphi 0, %s50
      %s68 = sphi 0, %s68
      %s70 = sphi 0, %s68
      %s71 = sphi 0, %s70
      %s85 = sphi 0, %s71
      %s89 = sphi 0, %s89
      %s91 = sphi 0, %s89
      %s92 = sphi 0, %s91
      %s106 = sphi 0, %s92
      %s112 = sphi 0, %s114
      %s115 = sphi 0, %s112
      %s116 = sphi 0, %s115
      %s132 = sphi 0, %s116
    $region4: #{tpu_custom_call.1} parent=1 // loop_header_branch
      %16 = sbr.rel (%p14) target = $region8
    $region5: #{tpu_custom_call.1} parent=1 // loop_body
      %s18 = ssub.s32 %s13, 1
      %s19 = ssub.s32 %s13, 2
      %s20 = sadd.s32 %s13, 1
      %s21 = ssub.s32 %s13, %s20
      %p22 = scmp.eq.s32.totalorder %s21, 0
      %s24 = sadd.s32 %s23, 1
      %s25 = scalar_select %p22, %s23, %s24
      %p28 = pneg %p22
      %p29 = scmp.eq.s32.totalorder %s13, 1
      %p30 = por %p28, %p29
      %p31 = scmp.ne.s32.totalorder %s23, %s26
      %p32 = scmp.eq.s32.totalorder %s13, 0
      %p33 = por %p31, %p32
      %p34 = scmp.ne.s32.totalorder %s23, %s26
      %p35 = scmp.eq.s32.totalorder %s18, 1
      %p36 = por %p34, %p35
      %p37 = scmp.ne.s32.totalorder %s26, %s27
      %p38 = scmp.eq.s32.totalorder %s18, 0
      %p39 = por %p37, %p38
      %p40 = scmp.ne.s32.totalorder %s26, %s27
      %p41 = scmp.eq.s32.totalorder %s19, 1
      %p42 = por %p40, %p41
      %p44 = scmp.ne.s32.totalorder %s27, %s43
      %p45 = scmp.eq.s32.totalorder %s19, 0
      %p46 = por %p44, %p45
      %s48 = sadd.s32 %s47, 1
      %p51 = scmp.eq.s32.totalorder %s13, 1
      %p52 = scmp.ne.s32.totalorder %s47, %s49
      %p53 = scmp.eq.s32.totalorder %s13, 0
      %p54 = por %p52, %p53
      %p55 = scmp.ne.s32.totalorder %s47, %s49
      %p56 = scmp.eq.s32.totalorder %s18, 1
      %p57 = por %p55, %p56
      %p58 = scmp.ne.s32.totalorder %s49, %s50
      %p59 = scmp.eq.s32.totalorder %s18, 0
      %p60 = por %p58, %p59
      %p61 = scmp.ne.s32.totalorder %s49, %s50
      %p62 = scmp.eq.s32.totalorder %s19, 1
      %p63 = por %p61, %p62
      %p65 = scmp.ne.s32.totalorder %s50, %s64
      %p66 = scmp.eq.s32.totalorder %s19, 0
      %p67 = por %p65, %p66
      %s69 = sadd.s32 %s68, 1
      %p72 = scmp.eq.s32.totalorder %s13, 1
      %p73 = scmp.ne.s32.totalorder %s68, %s70
      %p74 = scmp.eq.s32.totalorder %s13, 0
      %p75 = por %p73, %p74
      %p76 = scmp.ne.s32.totalorder %s68, %s70
      %p77 = scmp.eq.s32.totalorder %s18, 1
      %p78 = por %p76, %p77
      %p79 = scmp.ne.s32.totalorder %s70, %s71
      %p80 = scmp.eq.s32.totalorder %s18, 0
      %p81 = por %p79, %p80
      %p82 = scmp.ne.s32.totalorder %s70, %s71
      %p83 = scmp.eq.s32.totalorder %s19, 1
      %p84 = por %p82, %p83
      %p86 = scmp.ne.s32.totalorder %s71, %s85
      %p87 = scmp.eq.s32.totalorder %s19, 0
      %p88 = por %p86, %p87
      %s90 = sadd.s32 %s89, 1
      %p93 = scmp.eq.s32.totalorder %s13, 1
      %p94 = scmp.ne.s32.totalorder %s89, %s91
      %p95 = scmp.eq.s32.totalorder %s13, 0
      %p96 = por %p94, %p95
      %p97 = scmp.ne.s32.totalorder %s89, %s91
      %p98 = scmp.eq.s32.totalorder %s18, 1
      %p99 = por %p97, %p98
      %p100 = scmp.ne.s32.totalorder %s91, %s92
      %p101 = scmp.eq.s32.totalorder %s18, 0
      %p102 = por %p100, %p101
      %p103 = scmp.ne.s32.totalorder %s91, %s92
      %p104 = scmp.eq.s32.totalorder %s19, 1
      %p105 = por %p103, %p104
      %p107 = scmp.ne.s32.totalorder %s92, %s106
      %p108 = scmp.eq.s32.totalorder %s19, 0
      %p109 = por %p107, %p108
      %s110 = ssub.s32 %s13, %s20
      %p111 = scmp.eq.s32.totalorder %s110, 0
      %s113 = sadd.s32 %s112, 1
      %s114 = scalar_select %p111, %s112, %s113
      %p117 = pneg %p111
      %p118 = scmp.eq.s32.totalorder %s13, 1
      %p119 = por %p117, %p118
      %p120 = scmp.ne.s32.totalorder %s112, %s115
      %p121 = scmp.eq.s32.totalorder %s13, 0
      %p122 = por %p120, %p121
      %p123 = scmp.ne.s32.totalorder %s112, %s115
      %p124 = scmp.eq.s32.totalorder %s18, 1
      %p125 = por %p123, %p124
      %p126 = scmp.ne.s32.totalorder %s115, %s116
      %p127 = scmp.eq.s32.totalorder %s18, 0
      %p128 = por %p126, %p127
      %p129 = scmp.ne.s32.totalorder %s115, %s116
      %p130 = scmp.eq.s32.totalorder %s19, 1
      %p131 = por %p129, %p130
      %p133 = scmp.ne.s32.totalorder %s116, %s132
      %p134 = scmp.eq.s32.totalorder %s19, 0
      %p135 = por %p133, %p134
      %p136 = scmp.le.s32.totalorder 1, %s13
      %p137 = scmp.lt.s32.totalorder %s13, 3
      %p138 = pnand %p136, %p137
      %p139 = pneg %p138
      // Predicated region
      $region9: #{tpu_custom_call.1} parent=5 // pred_check
        _
      $region10: #{tpu_custom_call.1} parent=5 // pred_check_branch
        %141 = sbr.rel (%p138) target = $region12
      $region11: #{tpu_custom_call.1} parent=5 // pred_region
        %s142 = ssub.s32 %s13, 1
        // Predicated region
        $region13: #{tpu_custom_call.1} parent=11 // pred_check
          %p143 = pneg %p60
        $region14: #{tpu_custom_call.1} parent=11 // pred_check_branch
          %145 = sbr.rel (%p143) target = $region16
        $region15: #{tpu_custom_call.1} parent=11 // pred_region
          _
        $region16: #{tpu_custom_call.1} parent=11 // pred_fallthru
          _
        // Predicated region
        $region17: #{tpu_custom_call.1} parent=11 // pred_check
          %p146 = pneg %p81
        $region18: #{tpu_custom_call.1} parent=11 // pred_check_branch
          %148 = sbr.rel (%p146) target = $region20
        $region19: #{tpu_custom_call.1} parent=11 // pred_region
          _
        $region20: #{tpu_custom_call.1} parent=11 // pred_fallthru
          _
        // Predicated region
        $region21: #{tpu_custom_call.1} parent=11 // pred_check
          %p149 = pneg %p102
        $region22: #{tpu_custom_call.1} parent=11 // pred_check_branch
          %151 = sbr.rel (%p149) target = $region24
        $region23: #{tpu_custom_call.1} parent=11 // pred_region
          _
        $region24: #{tpu_custom_call.1} parent=11 // pred_fallthru
          _
      $region12: #{tpu_custom_call.1} parent=5 // pred_fallthru
        _
      %p152 = scmp.lt.s32.totalorder %s13, 2
      // Predicated region
      $region25: #{tpu_custom_call.1} parent=5 // pred_check
        %p153 = pneg %p152
      $region26: #{tpu_custom_call.1} parent=5 // pred_check_branch
        %155 = sbr.rel (%p153) target = $region28
      $region27: #{tpu_custom_call.1} parent=5 // pred_region
        // Predicated region
        $region29: #{tpu_custom_call.1} parent=27 // pred_check
          %p156 = pneg %p33
        $region30: #{tpu_custom_call.1} parent=27 // pred_check_branch
          %158 = sbr.rel (%p156) target = $region32
        $region31: #{tpu_custom_call.1} parent=27 // pred_region
          %p159 = scmp.lt.s32.totalorder %s13, 1
          %s160 = scalar_select %p159, %s13, 1
          %s161 = smul.addr %s160, 4
          %s162 = smul.addr %s161, 4
          %s163 = scalar_lea.vmem %s0, %s162
        $region32: #{tpu_custom_call.1} parent=27 // pred_fallthru
          _
      $region28: #{tpu_custom_call.1} parent=5 // pred_fallthru
        _
      %p164 = scmp.le.s32.totalorder 1, %s13
      %p165 = scmp.lt.s32.totalorder %s13, 3
      %p166 = pnand %p164, %p165
      %p167 = pneg %p166
      // Predicated region
      $region33: #{tpu_custom_call.1} parent=5 // pred_check
        _
      $region34: #{tpu_custom_call.1} parent=5 // pred_check_branch
        %169 = sbr.rel (%p166) target = $region36
      $region35: #{tpu_custom_call.1} parent=5 // pred_region
        %s170 = ssub.s32 %s13, 1
        %p171 = scmp.lt.s32.totalorder %s18, 1
        %s172 = scalar_select %p171, %s18, 1
        %s173 = smul.addr %s172, 4
        %s174 = smul.addr %s173, 4
        %s175 = scalar_lea.vmem %s0, %s174
        %p176 = pneg %p39
        %p177 = pneg %p36
        %p178 = pneg %p60
        %p179 = pneg %p57
        %p180 = pneg %p81
        %p181 = pneg %p78
        %p182 = pneg %p102
        %p183 = pneg %p99
        %p184 = pneg %p128
        %p185 = pneg %p125
        %s186 = sand.u32 %s115, 1
        %s187 = scalar_lea.sflag [#allocation4], %s186
        %s188 = sand.u32 %s115, 1
        %s189 = smul.addr %s188, 12
        %s190 = scalar_lea.vmem [#allocation3], %s189
        %p191 = scmp.lt.s32.totalorder %s18, 1
        %s192 = scalar_select %p191, %s18, 1
        %s193 = smul.addr %s192, 4
        %s194 = smul.addr %s193, 4
        %s195 = scalar_lea.vmem %s0, %s194
        %v196 = vld [vmem:[%s3] ss:$8 sm:$0x7]
        %vm197 = vcmp.gt.f32.partialorder %v196, 0.5
        %s198 = scalar_lea.vmem %s3, 1
        %v199 = vld [vmem:[%s198] ss:$8 sm:$0x7]
        %vm200 = vcmp.gt.f32.partialorder %v199, 0.5
        %s201 = scalar_lea.vmem %s3, 2
        %v202 = vld [vmem:[%s201] ss:$8 sm:$0x7]
        %vm203 = vcmp.gt.f32.partialorder %v202, 0.5
        %s204 = scalar_lea.vmem %s3, 3
        %v205 = vld [vmem:[%s204] ss:$8 sm:$0x7]
        %vm206 = vcmp.gt.f32.partialorder %v205, 0.5
        %s207 = scalar_lea.vmem %s3, 4
        %v208 = vld [vmem:[%s207] ss:$8 sm:$0x7]
        %vm209 = vcmp.gt.f32.partialorder %v208, 0.5
        %v210 = vld [vmem:[%s1] sm:$0xf]
        %v211 = vld [vmem:[%s195] sm:$0xff]
        %v212 = vld [vmem:[%s195 + $0x8] sm:$0xff]
        %s213 = scalar_lea.vmem %s1, 4
        %v214 = vld [vmem:[%s213] sm:$0xf]
        %217 = vst [vmem:[#allocation1] ss:$2 sm:$0xff] %v211
        %s218 = scalar_lea.vmem [#allocation1], 16
        %219 = vst [vmem:[%s218] ss:$2 sm:$0xff] %v212
        %v220 = vld.sshfl [vmem:[#allocation1] sm:$0xff pattern:$0x75316420]
        %v221 = vld.sshfl [vmem:[#allocation1 + $0x8] sm:$0xff pattern:$0x75316420]
        %v222 = vld.sshfl [vmem:[#allocation1 + $0x10] sm:$0xff pattern:$0x75316420]
        %v223 = vld.sshfl [vmem:[#allocation1 + $0x18] sm:$0xff pattern:$0x75316420]
        %224 = vrot.lane.b32.xlu0 %v220, 82
        %v225 = vpop.permute.xlu0 %224
        %226 = vrot.lane.b32.xlu0 %v221, 82
        %v227 = vpop.permute.xlu0 %226
        %228 = vrot.lane.b32.xlu0 %v222, 82
        %v229 = vpop.permute.xlu0 %228
        %230 = vrot.lane.b32.xlu0 %v223, 82
        %v231 = vpop.permute.xlu0 %230
        %vm232 = vcmask 670720
        %v233 = vsel %vm232, %v225, %v227
        %v234 = vsel %vm232, %v227, %v229
        %v235 = vsel %vm232, %v229, %v231
        %vm236 = vcmask 31744
        %v238 = vsel %vm236, %v214, 0
        %vm240 = vcmask 1043456
        %v241 = vsel %vm240, %v233, 0
        %v243 = vsel %vm240, %v234, 0
        %v245 = vsel %vm240, %v235, 0
        %247 = vmatpush.msra.mxu0 0.0
        %248 = vmatpush.msra.mxu0 0.0
        %249 = vmatpush.msra.mxu0 0.0
        %250 = vmatpush.msra.mxu0 0.0
        %251 = vmatpush.msra.mxu0 0.0
        %252 = vmatpush.msra.mxu0 0.0
        %253 = vmatpush.msra.mxu0 0.0
        %254 = vmatpush.msra.mxu0 0.0
        %255 = vmatpush.msra.mxu0 0.0
        %256 = vmatpush.msra.mxu0 0.0
        %257 = vmatpush.msra.mxu0 0.0
        %258 = vmatpush.msra.mxu0 0.0
        %259 = vmatpush.msra.mxu0 0.0
        %260 = vmatpush.msra.mxu0 0.0
        %261 = vmatpush.msra.mxu0 0.0
        %262 = vmatpush.msra.mxu0 %v241
        %263 = vmatmul.f32.gmra.mxu0 %v238
        %v264 = vpop.f32.mrf.mxu0
        %v265 = vadd.f32 0.0, %v264
        %266 = vdwg.mxu0
        %267 = vmatpush.msra.mxu0 0.0
        %268 = vmatpush.msra.mxu0 0.0
        %269 = vmatpush.msra.mxu0 0.0
        %270 = vmatpush.msra.mxu0 0.0
        %271 = vmatpush.msra.mxu0 0.0
        %272 = vmatpush.msra.mxu0 0.0
        %273 = vmatpush.msra.mxu0 0.0
        %274 = vmatpush.msra.mxu0 0.0
        %275 = vmatpush.msra.mxu0 0.0
        %276 = vmatpush.msra.mxu0 0.0
        %277 = vmatpush.msra.mxu0 0.0
        %278 = vmatpush.msra.mxu0 0.0
        %279 = vmatpush.msra.mxu0 0.0
        %280 = vmatpush.msra.mxu0 0.0
        %281 = vmatpush.msra.mxu0 0.0
        %282 = vmatpush.msra.mxu0 %v243
        %283 = vmatmul.f32.gmra.mxu0 %v238
        %v284 = vpop.f32.mrf.mxu0
        %v285 = vadd.f32 0.0, %v284
        %286 = vdwg.mxu0
        %287 = vmatpush.msra.mxu0 0.0
        %288 = vmatpush.msra.mxu0 0.0
        %289 = vmatpush.msra.mxu0 0.0
        %290 = vmatpush.msra.mxu0 0.0
        %291 = vmatpush.msra.mxu0 0.0
        %292 = vmatpush.msra.mxu0 0.0
        %293 = vmatpush.msra.mxu0 0.0
        %294 = vmatpush.msra.mxu0 0.0
        %295 = vmatpush.msra.mxu0 0.0
        %296 = vmatpush.msra.mxu0 0.0
        %297 = vmatpush.msra.mxu0 0.0
        %298 = vmatpush.msra.mxu0 0.0
        %299 = vmatpush.msra.mxu0 0.0
        %300 = vmatpush.msra.mxu0 0.0
        %301 = vmatpush.msra.mxu0 0.0
        %302 = vmatpush.msra.mxu0 %v245
        %303 = vmatmul.f32.gmra.mxu0 %v238
        %v304 = vpop.f32.mrf.mxu0
        %v305 = vadd.f32 0.0, %v304
        %306 = vdwg.mxu0
        %307 = vst [vmem:[#allocation1] ss:$2 sm:$0xff] %v211
        %s308 = scalar_lea.vmem [#allocation1], 16
        %309 = vst [vmem:[%s308] ss:$2 sm:$0xff] %v212
        %v310 = vld.sshfl [vmem:[#allocation1] sm:$0xff pattern:$0x75316420]
        %v311 = vld.sshfl [vmem:[#allocation1 + $0x8] sm:$0xff pattern:$0x75316420]
        %v312 = vld.sshfl [vmem:[#allocation1 + $0x10] sm:$0xff pattern:$0x75316420]
        %v313 = vld.sshfl [vmem:[#allocation1 + $0x18] sm:$0xff pattern:$0x75316420]
        %314 = vrot.lane.b32.xlu0 %v310, 83
        %v315 = vpop.permute.xlu0 %314
        %316 = vrot.lane.b32.xlu0 %v311, 83
        %v317 = vpop.permute.xlu0 %316
        %318 = vrot.lane.b32.xlu0 %v312, 83
        %v319 = vpop.permute.xlu0 %318
        %320 = vrot.lane.b32.xlu0 %v313, 83
        %v321 = vpop.permute.xlu0 %320
        %vm322 = vcmask 678912
        %v323 = vsel %vm322, %v315, %v317
        %v324 = vsel %vm322, %v317, %v319
        %v325 = vsel %vm322, %v319, %v321
        %v327 = vsel %vm236, %v210, 0
        %v329 = vsel %vm240, %v323, 0
        %v331 = vsel %vm240, %v324, 0
        %v333 = vsel %vm240, %v325, 0
        %335 = vmatpush.msra.mxu0 0.0
        %336 = vmatpush.msra.mxu0 0.0
        %337 = vmatpush.msra.mxu0 0.0
        %338 = vmatpush.msra.mxu0 0.0
        %339 = vmatpush.msra.mxu0 0.0
        %340 = vmatpush.msra.mxu0 0.0
        %341 = vmatpush.msra.mxu0 0.0
        %342 = vmatpush.msra.mxu0 0.0
        %343 = vmatpush.msra.mxu0 0.0
        %344 = vmatpush.msra.mxu0 0.0
        %345 = vmatpush.msra.mxu0 0.0
        %346 = vmatpush.msra.mxu0 0.0
        %347 = vmatpush.msra.mxu0 0.0
        %348 = vmatpush.msra.mxu0 0.0
        %349 = vmatpush.msra.mxu0 0.0
        %350 = vmatpush.msra.mxu0 %v329
        %351 = vmatmul.f32.gmra.mxu0 %v327
        %v352 = vpop.f32.mrf.mxu0
        %v353 = vadd.f32 %v265, %v352
        %354 = vdwg.mxu0
        %355 = vmatpush.msra.mxu0 0.0
        %356 = vmatpush.msra.mxu0 0.0
        %357 = vmatpush.msra.mxu0 0.0
        %358 = vmatpush.msra.mxu0 0.0
        %359 = vmatpush.msra.mxu0 0.0
        %360 = vmatpush.msra.mxu0 0.0
        %361 = vmatpush.msra.mxu0 0.0
        %362 = vmatpush.msra.mxu0 0.0
        %363 = vmatpush.msra.mxu0 0.0
        %364 = vmatpush.msra.mxu0 0.0
        %365 = vmatpush.msra.mxu0 0.0
        %366 = vmatpush.msra.mxu0 0.0
        %367 = vmatpush.msra.mxu0 0.0
        %368 = vmatpush.msra.mxu0 0.0
        %369 = vmatpush.msra.mxu0 0.0
        %370 = vmatpush.msra.mxu0 %v331
        %371 = vmatmul.f32.gmra.mxu0 %v327
        %v372 = vpop.f32.mrf.mxu0
        %v373 = vadd.f32 %v285, %v372
        %374 = vdwg.mxu0
        %375 = vmatpush.msra.mxu0 0.0
        %376 = vmatpush.msra.mxu0 0.0
        %377 = vmatpush.msra.mxu0 0.0
        %378 = vmatpush.msra.mxu0 0.0
        %379 = vmatpush.msra.mxu0 0.0
        %380 = vmatpush.msra.mxu0 0.0
        %381 = vmatpush.msra.mxu0 0.0
        %382 = vmatpush.msra.mxu0 0.0
        %383 = vmatpush.msra.mxu0 0.0
        %384 = vmatpush.msra.mxu0 0.0
        %385 = vmatpush.msra.mxu0 0.0
        %386 = vmatpush.msra.mxu0 0.0
        %387 = vmatpush.msra.mxu0 0.0
        %388 = vmatpush.msra.mxu0 0.0
        %389 = vmatpush.msra.mxu0 0.0
        %390 = vmatpush.msra.mxu0 %v333
        %391 = vmatmul.f32.gmra.mxu0 %v327
        %v392 = vpop.f32.mrf.mxu0
        %v393 = vadd.f32 %v305, %v392
        %394 = vdwg.mxu0
        %s395 = scalar_lea.vmem %s1, 8
        %v396 = vld [vmem:[%s395] sm:$0xf]
        %v397 = vld [vmem:[%s195] sm:$0xff]
        %v398 = vld [vmem:[%s195 + $0x8] sm:$0xff]
        %401 = vst [vmem:[#allocation1] ss:$2 sm:$0xff] %v397
        %s402 = scalar_lea.vmem [#allocation1], 16
        %403 = vst [vmem:[%s402] ss:$2 sm:$0xff] %v398
        %v404 = vld.sshfl [vmem:[#allocation1] sm:$0xff pattern:$0x75316420]
        %v405 = vld.sshfl [vmem:[#allocation1 + $0x8] sm:$0xff pattern:$0x75316420]
        %v406 = vld.sshfl [vmem:[#allocation1 + $0x10] sm:$0xff pattern:$0x75316420]
        %v407 = vld.sshfl [vmem:[#allocation1 + $0x18] sm:$0xff pattern:$0x75316420]
        %408 = vrot.lane.b32.xlu0 %v404, 81
        %v409 = vpop.permute.xlu0 %408
        %410 = vrot.lane.b32.xlu0 %v405, 81
        %v411 = vpop.permute.xlu0 %410
        %412 = vrot.lane.b32.xlu0 %v406, 81
        %v413 = vpop.permute.xlu0 %412
        %414 = vrot.lane.b32.xlu0 %v407, 81
        %v415 = vpop.permute.xlu0 %414
        %vm416 = vcmask 662528
        %v417 = vsel %vm416, %v409, %v411
        %v418 = vsel %vm416, %v411, %v413
        %v419 = vsel %vm416, %v413, %v415
        %v421 = vsel %vm236, %v396, 0
        %v423 = vsel %vm240, %v417, 0
        %v425 = vsel %vm240, %v418, 0
        %v427 = vsel %vm240, %v419, 0
        %429 = vmatpush.msra.mxu0 0.0
        %430 = vmatpush.msra.mxu0 0.0
        %431 = vmatpush.msra.mxu0 0.0
        %432 = vmatpush.msra.mxu0 0.0
        %433 = vmatpush.msra.mxu0 0.0
        %434 = vmatpush.msra.mxu0 0.0
        %435 = vmatpush.msra.mxu0 0.0
        %436 = vmatpush.msra.mxu0 0.0
        %437 = vmatpush.msra.mxu0 0.0
        %438 = vmatpush.msra.mxu0 0.0
        %439 = vmatpush.msra.mxu0 0.0
        %440 = vmatpush.msra.mxu0 0.0
        %441 = vmatpush.msra.mxu0 0.0
        %442 = vmatpush.msra.mxu0 0.0
        %443 = vmatpush.msra.mxu0 0.0
        %444 = vmatpush.msra.mxu0 %v423
        %445 = vmatmul.f32.gmra.mxu0 %v421
        %v446 = vpop.f32.mrf.mxu0
        %v447 = vadd.f32 0.0, %v446
        %448 = vdwg.mxu0
        %449 = vmatpush.msra.mxu0 0.0
        %450 = vmatpush.msra.mxu0 0.0
        %451 = vmatpush.msra.mxu0 0.0
        %452 = vmatpush.msra.mxu0 0.0
        %453 = vmatpush.msra.mxu0 0.0
        %454 = vmatpush.msra.mxu0 0.0
        %455 = vmatpush.msra.mxu0 0.0
        %456 = vmatpush.msra.mxu0 0.0
        %457 = vmatpush.msra.mxu0 0.0
        %458 = vmatpush.msra.mxu0 0.0
        %459 = vmatpush.msra.mxu0 0.0
        %460 = vmatpush.msra.mxu0 0.0
        %461 = vmatpush.msra.mxu0 0.0
        %462 = vmatpush.msra.mxu0 0.0
        %463 = vmatpush.msra.mxu0 0.0
        %464 = vmatpush.msra.mxu0 %v425
        %465 = vmatmul.f32.gmra.mxu0 %v421
        %v466 = vpop.f32.mrf.mxu0
        %v467 = vadd.f32 0.0, %v466
        %468 = vdwg.mxu0
        %469 = vmatpush.msra.mxu0 0.0
        %470 = vmatpush.msra.mxu0 0.0
        %471 = vmatpush.msra.mxu0 0.0
        %472 = vmatpush.msra.mxu0 0.0
        %473 = vmatpush.msra.mxu0 0.0
        %474 = vmatpush.msra.mxu0 0.0
        %475 = vmatpush.msra.mxu0 0.0
        %476 = vmatpush.msra.mxu0 0.0
        %477 = vmatpush.msra.mxu0 0.0
        %478 = vmatpush.msra.mxu0 0.0
        %479 = vmatpush.msra.mxu0 0.0
        %480 = vmatpush.msra.mxu0 0.0
        %481 = vmatpush.msra.mxu0 0.0
        %482 = vmatpush.msra.mxu0 0.0
        %483 = vmatpush.msra.mxu0 0.0
        %484 = vmatpush.msra.mxu0 %v427
        %485 = vmatmul.f32.gmra.mxu0 %v421
        %v486 = vpop.f32.mrf.mxu0
        %v487 = vadd.f32 0.0, %v486
        %488 = vdwg.mxu0
        %v489 = vadd.f32 %v353, %v447
        %v490 = vadd.f32 %v373, %v467
        %v491 = vadd.f32 %v393, %v487
        %s492 = scalar_lea.vmem %s1, 12
        %v493 = vld [vmem:[%s492] sm:$0xf]
        %v494 = vld [vmem:[%s195] sm:$0xff]
        %v495 = vld [vmem:[%s195 + $0x8] sm:$0xff]
        %498 = vst [vmem:[#allocation1] ss:$2 sm:$0xff] %v494
        %s499 = scalar_lea.vmem [#allocation1], 16
        %500 = vst [vmem:[%s499] ss:$2 sm:$0xff] %v495
        %v501 = vld.sshfl [vmem:[#allocation1] sm:$0xff pattern:$0x75316420]
        %v502 = vld.sshfl [vmem:[#allocation1 + $0x8] sm:$0xff pattern:$0x75316420]
        %v503 = vld.sshfl [vmem:[#allocation1 + $0x10] sm:$0xff pattern:$0x75316420]
        %v504 = vld.sshfl [vmem:[#allocation1 + $0x18] sm:$0xff pattern:$0x75316420]
        %505 = vrot.lane.b32.xlu0 %v501, 65
        %v506 = vpop.permute.xlu0 %505
        %507 = vrot.lane.b32.xlu0 %v502, 65
        %v508 = vpop.permute.xlu0 %507
        %509 = vrot.lane.b32.xlu0 %v503, 65
        %v510 = vpop.permute.xlu0 %509
        %511 = vrot.lane.b32.xlu0 %v504, 65
        %v512 = vpop.permute.xlu0 %511
        %vm513 = vcmask 531456
        %v514 = vsel %vm513, %v506, %v508
        %v515 = vsel %vm513, %v508, %v510
        %v516 = vsel %vm513, %v510, %v512
        %v518 = vsel %vm236, %v493, 0
        %v520 = vsel %vm240, %v514, 0
        %v522 = vsel %vm240, %v515, 0
        %v524 = vsel %vm240, %v516, 0
        %526 = vmatpush.msra.mxu0 0.0
        %527 = vmatpush.msra.mxu0 0.0
        %528 = vmatpush.msra.mxu0 0.0
        %529 = vmatpush.msra.mxu0 0.0
        %530 = vmatpush.msra.mxu0 0.0
        %531 = vmatpush.msra.mxu0 0.0
        %532 = vmatpush.msra.mxu0 0.0
        %533 = vmatpush.msra.mxu0 0.0
        %534 = vmatpush.msra.mxu0 0.0
        %535 = vmatpush.msra.mxu0 0.0
        %536 = vmatpush.msra.mxu0 0.0
        %537 = vmatpush.msra.mxu0 0.0
        %538 = vmatpush.msra.mxu0 0.0
        %539 = vmatpush.msra.mxu0 0.0
        %540 = vmatpush.msra.mxu0 0.0
        %541 = vmatpush.msra.mxu0 %v520
        %542 = vmatmul.f32.gmra.mxu0 %v518
        %v543 = vpop.f32.mrf.mxu0
        %v544 = vadd.f32 0.0, %v543
        %545 = vdwg.mxu0
        %546 = vmatpush.msra.mxu0 0.0
        %547 = vmatpush.msra.mxu0 0.0
        %548 = vmatpush.msra.mxu0 0.0
        %549 = vmatpush.msra.mxu0 0.0
        %550 = vmatpush.msra.mxu0 0.0
        %551 = vmatpush.msra.mxu0 0.0
        %552 = vmatpush.msra.mxu0 0.0
        %553 = vmatpush.msra.mxu0 0.0
        %554 = vmatpush.msra.mxu0 0.0
        %555 = vmatpush.msra.mxu0 0.0
        %556 = vmatpush.msra.mxu0 0.0
        %557 = vmatpush.msra.mxu0 0.0
        %558 = vmatpush.msra.mxu0 0.0
        %559 = vmatpush.msra.mxu0 0.0
        %560 = vmatpush.msra.mxu0 0.0
        %561 = vmatpush.msra.mxu0 %v522
        %562 = vmatmul.f32.gmra.mxu0 %v518
        %v563 = vpop.f32.mrf.mxu0
        %v564 = vadd.f32 0.0, %v563
        %565 = vdwg.mxu0
        %566 = vmatpush.msra.mxu0 0.0
        %567 = vmatpush.msra.mxu0 0.0
        %568 = vmatpush.msra.mxu0 0.0
        %569 = vmatpush.msra.mxu0 0.0
        %570 = vmatpush.msra.mxu0 0.0
        %571 = vmatpush.msra.mxu0 0.0
        %572 = vmatpush.msra.mxu0 0.0
        %573 = vmatpush.msra.mxu0 0.0
        %574 = vmatpush.msra.mxu0 0.0
        %575 = vmatpush.msra.mxu0 0.0
        %576 = vmatpush.msra.mxu0 0.0
        %577 = vmatpush.msra.mxu0 0.0
        %578 = vmatpush.msra.mxu0 0.0
        %579 = vmatpush.msra.mxu0 0.0
        %580 = vmatpush.msra.mxu0 0.0
        %581 = vmatpush.msra.mxu0 %v524
        %582 = vmatmul.f32.gmra.mxu0 %v518
        %v583 = vpop.f32.mrf.mxu0
        %v584 = vadd.f32 0.0, %v583
        %585 = vdwg.mxu0
        %v586 = vadd.f32 %v489, %v544
        %v587 = vadd.f32 %v490, %v564
        %v588 = vadd.f32 %v491, %v584
        %s589 = scalar_lea.vmem %s1, 16
        %v590 = vld [vmem:[%s589] sm:$0xf]
        %v591 = vld [vmem:[%s195] sm:$0xff]
        %v592 = vld [vmem:[%s195 + $0x8] sm:$0xff]
        %595 = vst [vmem:[#allocation1] ss:$2 sm:$0xff] %v591
        %s596 = scalar_lea.vmem [#allocation1], 16
        %597 = vst [vmem:[%s596] ss:$2 sm:$0xff] %v592
        %v598 = vld.sshfl [vmem:[#allocation1] sm:$0xff pattern:$0x75316420]
        %v599 = vld.sshfl [vmem:[#allocation1 + $0x8] sm:$0xff pattern:$0x75316420]
        %v600 = vld.sshfl [vmem:[#allocation1 + $0x10] sm:$0xff pattern:$0x75316420]
        %v601 = vld.sshfl [vmem:[#allocation1 + $0x18] sm:$0xff pattern:$0x75316420]
        %602 = vrot.lane.b32.xlu0 %v598, 64
        %v603 = vpop.permute.xlu0 %602
        %604 = vrot.lane.b32.xlu0 %v599, 64
        %v605 = vpop.permute.xlu0 %604
        %606 = vrot.lane.b32.xlu0 %v600, 64
        %v607 = vpop.permute.xlu0 %606
        %608 = vrot.lane.b32.xlu0 %v601, 64
        %v609 = vpop.permute.xlu0 %608
        %vm610 = vcmask 523264
        %v611 = vsel %vm610, %v603, %v605
        %v612 = vsel %vm610, %v605, %v607
        %v613 = vsel %vm610, %v607, %v609
        %v615 = vsel %vm236, %v590, 0
        %v617 = vsel %vm240, %v611, 0
        %v619 = vsel %vm240, %v612, 0
        %v621 = vsel %vm240, %v613, 0
        %623 = vmatpush.msra.mxu0 0.0
        %624 = vmatpush.msra.mxu0 0.0
        %625 = vmatpush.msra.mxu0 0.0
        %626 = vmatpush.msra.mxu0 0.0
        %627 = vmatpush.msra.mxu0 0.0
        %628 = vmatpush.msra.mxu0 0.0
        %629 = vmatpush.msra.mxu0 0.0
        %630 = vmatpush.msra.mxu0 0.0
        %631 = vmatpush.msra.mxu0 0.0
        %632 = vmatpush.msra.mxu0 0.0
        %633 = vmatpush.msra.mxu0 0.0
        %634 = vmatpush.msra.mxu0 0.0
        %635 = vmatpush.msra.mxu0 0.0
        %636 = vmatpush.msra.mxu0 0.0
        %637 = vmatpush.msra.mxu0 0.0
        %638 = vmatpush.msra.mxu0 %v617
        %639 = vmatmul.f32.gmra.mxu0 %v615
        %v640 = vpop.f32.mrf.mxu0
        %v641 = vadd.f32 0.0, %v640
        %642 = vdwg.mxu0
        %643 = vmatpush.msra.mxu0 0.0
        %644 = vmatpush.msra.mxu0 0.0
        %645 = vmatpush.msra.mxu0 0.0
        %646 = vmatpush.msra.mxu0 0.0
        %647 = vmatpush.msra.mxu0 0.0
        %648 = vmatpush.msra.mxu0 0.0
        %649 = vmatpush.msra.mxu0 0.0
        %650 = vmatpush.msra.mxu0 0.0
        %651 = vmatpush.msra.mxu0 0.0
        %652 = vmatpush.msra.mxu0 0.0
        %653 = vmatpush.msra.mxu0 0.0
        %654 = vmatpush.msra.mxu0 0.0
        %655 = vmatpush.msra.mxu0 0.0
        %656 = vmatpush.msra.mxu0 0.0
        %657 = vmatpush.msra.mxu0 0.0
        %658 = vmatpush.msra.mxu0 %v619
        %659 = vmatmul.f32.gmra.mxu0 %v615
        %v660 = vpop.f32.mrf.mxu0
        %v661 = vadd.f32 0.0, %v660
        %662 = vdwg.mxu0
        %663 = vmatpush.msra.mxu0 0.0
        %664 = vmatpush.msra.mxu0 0.0
        %665 = vmatpush.msra.mxu0 0.0
        %666 = vmatpush.msra.mxu0 0.0
        %667 = vmatpush.msra.mxu0 0.0
        %668 = vmatpush.msra.mxu0 0.0
        %669 = vmatpush.msra.mxu0 0.0
        %670 = vmatpush.msra.mxu0 0.0
        %671 = vmatpush.msra.mxu0 0.0
        %672 = vmatpush.msra.mxu0 0.0
        %673 = vmatpush.msra.mxu0 0.0
        %674 = vmatpush.msra.mxu0 0.0
        %675 = vmatpush.msra.mxu0 0.0
        %676 = vmatpush.msra.mxu0 0.0
        %677 = vmatpush.msra.mxu0 0.0
        %678 = vmatpush.msra.mxu0 %v621
        %679 = vmatmul.f32.gmra.mxu0 %v615
        %v680 = vpop.f32.mrf.mxu0
        %v681 = vadd.f32 0.0, %v680
        %682 = vdwg.mxu0
        %v683 = vadd.f32 %v586, %v641
        %v684 = vadd.f32 %v587, %v661
        %v685 = vadd.f32 %v588, %v681
        %s686 = scalar_lea.vmem %s1, 20
        %v687 = vld [vmem:[%s686] sm:$0xf]
        %v688 = vld [vmem:[%s195] sm:$0xff]
        %v689 = vld [vmem:[%s195 + $0x8] sm:$0xff]
        %692 = vst [vmem:[#allocation1] ss:$2 sm:$0xff] %v688
        %s693 = scalar_lea.vmem [#allocation1], 16
        %694 = vst [vmem:[%s693] ss:$2 sm:$0xff] %v689
        %v695 = vld.sshfl [vmem:[#allocation1] sm:$0xff pattern:$0x75316420]
        %v696 = vld.sshfl [vmem:[#allocation1 + $0x8] sm:$0xff pattern:$0x75316420]
        %v697 = vld.sshfl [vmem:[#allocation1 + $0x10] sm:$0xff pattern:$0x75316420]
        %v698 = vld.sshfl [vmem:[#allocation1 + $0x18] sm:$0xff pattern:$0x75316420]
        %699 = vrot.lane.b32.xlu0 %v695, 63
        %v700 = vpop.permute.xlu0 %699
        %701 = vrot.lane.b32.xlu0 %v696, 63
        %v702 = vpop.permute.xlu0 %701
        %703 = vrot.lane.b32.xlu0 %v697, 63
        %v704 = vpop.permute.xlu0 %703
        %705 = vrot.lane.b32.xlu0 %v698, 63
        %v706 = vpop.permute.xlu0 %705
        %vm707 = vcmask 515072
        %v708 = vsel %vm707, %v700, %v702
        %v709 = vsel %vm707, %v702, %v704
        %v710 = vsel %vm707, %v704, %v706
        %v712 = vsel %vm236, %v687, 0
        %v714 = vsel %vm240, %v708, 0
        %v716 = vsel %vm240, %v709, 0
        %v718 = vsel %vm240, %v710, 0
        %720 = vmatpush.msra.mxu0 0.0
        %721 = vmatpush.msra.mxu0 0.0
        %722 = vmatpush.msra.mxu0 0.0
        %723 = vmatpush.msra.mxu0 0.0
        %724 = vmatpush.msra.mxu0 0.0
        %725 = vmatpush.msra.mxu0 0.0
        %726 = vmatpush.msra.mxu0 0.0
        %727 = vmatpush.msra.mxu0 0.0
        %728 = vmatpush.msra.mxu0 0.0
        %729 = vmatpush.msra.mxu0 0.0
        %730 = vmatpush.msra.mxu0 0.0
        %731 = vmatpush.msra.mxu0 0.0
        %732 = vmatpush.msra.mxu0 0.0
        %733 = vmatpush.msra.mxu0 0.0
        %734 = vmatpush.msra.mxu0 0.0
        %735 = vmatpush.msra.mxu0 %v714
        %736 = vmatmul.f32.gmra.mxu0 %v712
        %v737 = vpop.f32.mrf.mxu0
        %v738 = vadd.f32 0.0, %v737
        %739 = vdwg.mxu0
        %740 = vmatpush.msra.mxu0 0.0
        %741 = vmatpush.msra.mxu0 0.0
        %742 = vmatpush.msra.mxu0 0.0
        %743 = vmatpush.msra.mxu0 0.0
        %744 = vmatpush.msra.mxu0 0.0
        %745 = vmatpush.msra.mxu0 0.0
        %746 = vmatpush.msra.mxu0 0.0
        %747 = vmatpush.msra.mxu0 0.0
        %748 = vmatpush.msra.mxu0 0.0
        %749 = vmatpush.msra.mxu0 0.0
        %750 = vmatpush.msra.mxu0 0.0
        %751 = vmatpush.msra.mxu0 0.0
        %752 = vmatpush.msra.mxu0 0.0
        %753 = vmatpush.msra.mxu0 0.0
        %754 = vmatpush.msra.mxu0 0.0
        %755 = vmatpush.msra.mxu0 %v716
        %756 = vmatmul.f32.gmra.mxu0 %v712
        %v757 = vpop.f32.mrf.mxu0
        %v758 = vadd.f32 0.0, %v757
        %759 = vdwg.mxu0
        %760 = vmatpush.msra.mxu0 0.0
        %761 = vmatpush.msra.mxu0 0.0
        %762 = vmatpush.msra.mxu0 0.0
        %763 = vmatpush.msra.mxu0 0.0
        %764 = vmatpush.msra.mxu0 0.0
        %765 = vmatpush.msra.mxu0 0.0
        %766 = vmatpush.msra.mxu0 0.0
        %767 = vmatpush.msra.mxu0 0.0
        %768 = vmatpush.msra.mxu0 0.0
        %769 = vmatpush.msra.mxu0 0.0
        %770 = vmatpush.msra.mxu0 0.0
        %771 = vmatpush.msra.mxu0 0.0
        %772 = vmatpush.msra.mxu0 0.0
        %773 = vmatpush.msra.mxu0 0.0
        %774 = vmatpush.msra.mxu0 0.0
        %775 = vmatpush.msra.mxu0 %v718
        %776 = vmatmul.f32.gmra.mxu0 %v712
        %v777 = vpop.f32.mrf.mxu0
        %v778 = vadd.f32 0.0, %v777
        %779 = vdwg.mxu0
        %v780 = vadd.f32 %v683, %v738
        %v781 = vadd.f32 %v684, %v758
        %v782 = vadd.f32 %v685, %v778
        %s783 = scalar_lea.vmem %s1, 24
        %v784 = vld [vmem:[%s783] sm:$0xf]
        %v785 = vld [vmem:[%s195] sm:$0xff]
        %v786 = vld [vmem:[%s195 + $0x8] sm:$0xff]
        %789 = vst [vmem:[#allocation1] ss:$2 sm:$0xff] %v785
        %s790 = scalar_lea.vmem [#allocation1], 16
        %791 = vst [vmem:[%s790] ss:$2 sm:$0xff] %v786
        %v792 = vld.sshfl [vmem:[#allocation1] sm:$0xff pattern:$0x75316420]
        %v793 = vld.sshfl [vmem:[#allocation1 + $0x8] sm:$0xff pattern:$0x75316420]
        %v794 = vld.sshfl [vmem:[#allocation1 + $0x10] sm:$0xff pattern:$0x75316420]
        %v795 = vld.sshfl [vmem:[#allocation1 + $0x18] sm:$0xff pattern:$0x75316420]
        %796 = vrot.lane.b32.xlu0 %v792, 47
        %v797 = vpop.permute.xlu0 %796
        %798 = vrot.lane.b32.xlu0 %v793, 47
        %v799 = vpop.permute.xlu0 %798
        %800 = vrot.lane.b32.xlu0 %v794, 47
        %v801 = vpop.permute.xlu0 %800
        %802 = vrot.lane.b32.xlu0 %v795, 47
        %v803 = vpop.permute.xlu0 %802
        %vm804 = vcmask 384000
        %v805 = vsel %vm804, %v797, %v799
        %v806 = vsel %vm804, %v799, %v801
        %v807 = vsel %vm804, %v801, %v803
        %v809 = vsel %vm236, %v784, 0
        %v811 = vsel %vm240, %v805, 0
        %v813 = vsel %vm240, %v806, 0
        %v815 = vsel %vm240, %v807, 0
        %817 = vmatpush.msra.mxu0 0.0
        %818 = vmatpush.msra.mxu0 0.0
        %819 = vmatpush.msra.mxu0 0.0
        %820 = vmatpush.msra.mxu0 0.0
        %821 = vmatpush.msra.mxu0 0.0
        %822 = vmatpush.msra.mxu0 0.0
        %823 = vmatpush.msra.mxu0 0.0
        %824 = vmatpush.msra.mxu0 0.0
        %825 = vmatpush.msra.mxu0 0.0
        %826 = vmatpush.msra.mxu0 0.0
        %827 = vmatpush.msra.mxu0 0.0
        %828 = vmatpush.msra.mxu0 0.0
        %829 = vmatpush.msra.mxu0 0.0
        %830 = vmatpush.msra.mxu0 0.0
        %831 = vmatpush.msra.mxu0 0.0
        %832 = vmatpush.msra.mxu0 %v811
        %833 = vmatmul.f32.gmra.mxu0 %v809
        %v834 = vpop.f32.mrf.mxu0
        %v835 = vadd.f32 0.0, %v834
        %836 = vdwg.mxu0
        %837 = vmatpush.msra.mxu0 0.0
        %838 = vmatpush.msra.mxu0 0.0
        %839 = vmatpush.msra.mxu0 0.0
        %840 = vmatpush.msra.mxu0 0.0
        %841 = vmatpush.msra.mxu0 0.0
        %842 = vmatpush.msra.mxu0 0.0
        %843 = vmatpush.msra.mxu0 0.0
        %844 = vmatpush.msra.mxu0 0.0
        %845 = vmatpush.msra.mxu0 0.0
        %846 = vmatpush.msra.mxu0 0.0
        %847 = vmatpush.msra.mxu0 0.0
        %848 = vmatpush.msra.mxu0 0.0
        %849 = vmatpush.msra.mxu0 0.0
        %850 = vmatpush.msra.mxu0 0.0
        %851 = vmatpush.msra.mxu0 0.0
        %852 = vmatpush.msra.mxu0 %v813
        %853 = vmatmul.f32.gmra.mxu0 %v809
        %v854 = vpop.f32.mrf.mxu0
        %v855 = vadd.f32 0.0, %v854
        %856 = vdwg.mxu0
        %857 = vmatpush.msra.mxu0 0.0
        %858 = vmatpush.msra.mxu0 0.0
        %859 = vmatpush.msra.mxu0 0.0
        %860 = vmatpush.msra.mxu0 0.0
        %861 = vmatpush.msra.mxu0 0.0
        %862 = vmatpush.msra.mxu0 0.0
        %863 = vmatpush.msra.mxu0 0.0
        %864 = vmatpush.msra.mxu0 0.0
        %865 = vmatpush.msra.mxu0 0.0
        %866 = vmatpush.msra.mxu0 0.0
        %867 = vmatpush.msra.mxu0 0.0
        %868 = vmatpush.msra.mxu0 0.0
        %869 = vmatpush.msra.mxu0 0.0
        %870 = vmatpush.msra.mxu0 0.0
        %871 = vmatpush.msra.mxu0 0.0
        %872 = vmatpush.msra.mxu0 %v815
        %873 = vmatmul.f32.gmra.mxu0 %v809
        %v874 = vpop.f32.mrf.mxu0
        %v875 = vadd.f32 0.0, %v874
        %876 = vdwg.mxu0
        %v877 = vadd.f32 %v780, %v835
        %v878 = vadd.f32 %v781, %v855
        %v879 = vadd.f32 %v782, %v875
        %s880 = scalar_lea.vmem %s1, 28
        %v881 = vld [vmem:[%s880] sm:$0xf]
        %v882 = vld [vmem:[%s195] sm:$0xff]
        %v883 = vld [vmem:[%s195 + $0x8] sm:$0xff]
        %886 = vst [vmem:[#allocation1] ss:$2 sm:$0xff] %v882
        %s887 = scalar_lea.vmem [#allocation1], 16
        %888 = vst [vmem:[%s887] ss:$2 sm:$0xff] %v883
        %v889 = vld.sshfl [vmem:[#allocation1] sm:$0xff pattern:$0x75316420]
        %v890 = vld.sshfl [vmem:[#allocation1 + $0x8] sm:$0xff pattern:$0x75316420]
        %v891 = vld.sshfl [vmem:[#allocation1 + $0x10] sm:$0xff pattern:$0x75316420]
        %v892 = vld.sshfl [vmem:[#allocation1 + $0x18] sm:$0xff pattern:$0x75316420]
        %893 = vrot.lane.b32.xlu0 %v889, 46
        %v894 = vpop.permute.xlu0 %893
        %895 = vrot.lane.b32.xlu0 %v890, 46
        %v896 = vpop.permute.xlu0 %895
        %897 = vrot.lane.b32.xlu0 %v891, 46
        %v898 = vpop.permute.xlu0 %897
        %899 = vrot.lane.b32.xlu0 %v892, 46
        %v900 = vpop.permute.xlu0 %899
        %vm901 = vcmask 375808
        %v902 = vsel %vm901, %v894, %v896
        %v903 = vsel %vm901, %v896, %v898
        %v904 = vsel %vm901, %v898, %v900
        %v906 = vsel %vm236, %v881, 0
        %v908 = vsel %vm240, %v902, 0
        %v910 = vsel %vm240, %v903, 0
        %v912 = vsel %vm240, %v904, 0
        %914 = vmatpush.msra.mxu0 0.0
        %915 = vmatpush.msra.mxu0 0.0
        %916 = vmatpush.msra.mxu0 0.0
        %917 = vmatpush.msra.mxu0 0.0
        %918 = vmatpush.msra.mxu0 0.0
        %919 = vmatpush.msra.mxu0 0.0
        %920 = vmatpush.msra.mxu0 0.0
        %921 = vmatpush.msra.mxu0 0.0
        %922 = vmatpush.msra.mxu0 0.0
        %923 = vmatpush.msra.mxu0 0.0
        %924 = vmatpush.msra.mxu0 0.0
        %925 = vmatpush.msra.mxu0 0.0
        %926 = vmatpush.msra.mxu0 0.0
        %927 = vmatpush.msra.mxu0 0.0
        %928 = vmatpush.msra.mxu0 0.0
        %929 = vmatpush.msra.mxu0 %v908
        %930 = vmatmul.f32.gmra.mxu0 %v906
        %v931 = vpop.f32.mrf.mxu0
        %v932 = vadd.f32 0.0, %v931
        %933 = vdwg.mxu0
        %934 = vmatpush.msra.mxu0 0.0
        %935 = vmatpush.msra.mxu0 0.0
        %936 = vmatpush.msra.mxu0 0.0
        %937 = vmatpush.msra.mxu0 0.0
        %938 = vmatpush.msra.mxu0 0.0
        %939 = vmatpush.msra.mxu0 0.0
        %940 = vmatpush.msra.mxu0 0.0
        %941 = vmatpush.msra.mxu0 0.0
        %942 = vmatpush.msra.mxu0 0.0
        %943 = vmatpush.msra.mxu0 0.0
        %944 = vmatpush.msra.mxu0 0.0
        %945 = vmatpush.msra.mxu0 0.0
        %946 = vmatpush.msra.mxu0 0.0
        %947 = vmatpush.msra.mxu0 0.0
        %948 = vmatpush.msra.mxu0 0.0
        %949 = vmatpush.msra.mxu0 %v910
        %950 = vmatmul.f32.gmra.mxu0 %v906
        %v951 = vpop.f32.mrf.mxu0
        %v952 = vadd.f32 0.0, %v951
        %953 = vdwg.mxu0
        %954 = vmatpush.msra.mxu0 0.0
        %955 = vmatpush.msra.mxu0 0.0
        %956 = vmatpush.msra.mxu0 0.0
        %957 = vmatpush.msra.mxu0 0.0
        %958 = vmatpush.msra.mxu0 0.0
        %959 = vmatpush.msra.mxu0 0.0
        %960 = vmatpush.msra.mxu0 0.0
        %961 = vmatpush.msra.mxu0 0.0
        %962 = vmatpush.msra.mxu0 0.0
        %963 = vmatpush.msra.mxu0 0.0
        %964 = vmatpush.msra.mxu0 0.0
        %965 = vmatpush.msra.mxu0 0.0
        %966 = vmatpush.msra.mxu0 0.0
        %967 = vmatpush.msra.mxu0 0.0
        %968 = vmatpush.msra.mxu0 0.0
        %969 = vmatpush.msra.mxu0 %v912
        %970 = vmatmul.f32.gmra.mxu0 %v906
        %v971 = vpop.f32.mrf.mxu0
        %v972 = vadd.f32 0.0, %v971
        %973 = vdwg.mxu0
        %v974 = vadd.f32 %v877, %v932
        %v975 = vadd.f32 %v878, %v952
        %v976 = vadd.f32 %v879, %v972
        %s977 = scalar_lea.vmem %s1, 32
        %v978 = vld [vmem:[%s977] sm:$0xf]
        %v979 = vld [vmem:[%s195] sm:$0xff]
        %v980 = vld [vmem:[%s195 + $0x8] sm:$0xff]
        %983 = vst [vmem:[#allocation1] ss:$2 sm:$0xff] %v979
        %s984 = scalar_lea.vmem [#allocation1], 16
        %985 = vst [vmem:[%s984] ss:$2 sm:$0xff] %v980
        %v986 = vld.sshfl [vmem:[#allocation1] sm:$0xff pattern:$0x75316420]
        %v987 = vld.sshfl [vmem:[#allocation1 + $0x8] sm:$0xff pattern:$0x75316420]
        %v988 = vld.sshfl [vmem:[#allocation1 + $0x10] sm:$0xff pattern:$0x75316420]
        %v989 = vld.sshfl [vmem:[#allocation1 + $0x18] sm:$0xff pattern:$0x75316420]
        %990 = vrot.lane.b32.xlu0 %v986, 45
        %v991 = vpop.permute.xlu0 %990
        %992 = vrot.lane.b32.xlu0 %v987, 45
        %v993 = vpop.permute.xlu0 %992
        %994 = vrot.lane.b32.xlu0 %v988, 45
        %v995 = vpop.permute.xlu0 %994
        %996 = vrot.lane.b32.xlu0 %v989, 45
        %v997 = vpop.permute.xlu0 %996
        %vm998 = vcmask 367616
        %v999 = vsel %vm998, %v991, %v993
        %v1000 = vsel %vm998, %v993, %v995
        %v1001 = vsel %vm998, %v995, %v997
        %v1003 = vsel %vm236, %v978, 0
        %v1005 = vsel %vm240, %v999, 0
        %v1007 = vsel %vm240, %v1000, 0
        %v1009 = vsel %vm240, %v1001, 0
        %1011 = vmatpush.msra.mxu0 0.0
        %1012 = vmatpush.msra.mxu0 0.0
        %1013 = vmatpush.msra.mxu0 0.0
        %1014 = vmatpush.msra.mxu0 0.0
        %1015 = vmatpush.msra.mxu0 0.0
        %1016 = vmatpush.msra.mxu0 0.0
        %1017 = vmatpush.msra.mxu0 0.0
        %1018 = vmatpush.msra.mxu0 0.0
        %1019 = vmatpush.msra.mxu0 0.0
        %1020 = vmatpush.msra.mxu0 0.0
        %1021 = vmatpush.msra.mxu0 0.0
        %1022 = vmatpush.msra.mxu0 0.0
        %1023 = vmatpush.msra.mxu0 0.0
        %1024 = vmatpush.msra.mxu0 0.0
        %1025 = vmatpush.msra.mxu0 0.0
        %1026 = vmatpush.msra.mxu0 %v1005
        %1027 = vmatmul.f32.gmra.mxu0 %v1003
        %v1028 = vpop.f32.mrf.mxu0
        %v1029 = vadd.f32 0.0, %v1028
        %1030 = vdwg.mxu0
        %1031 = vmatpush.msra.mxu0 0.0
        %1032 = vmatpush.msra.mxu0 0.0
        %1033 = vmatpush.msra.mxu0 0.0
        %1034 = vmatpush.msra.mxu0 0.0
        %1035 = vmatpush.msra.mxu0 0.0
        %1036 = vmatpush.msra.mxu0 0.0
        %1037 = vmatpush.msra.mxu0 0.0
        %1038 = vmatpush.msra.mxu0 0.0
        %1039 = vmatpush.msra.mxu0 0.0
        %1040 = vmatpush.msra.mxu0 0.0
        %1041 = vmatpush.msra.mxu0 0.0
        %1042 = vmatpush.msra.mxu0 0.0
        %1043 = vmatpush.msra.mxu0 0.0
        %1044 = vmatpush.msra.mxu0 0.0
        %1045 = vmatpush.msra.mxu0 0.0
        %1046 = vmatpush.msra.mxu0 %v1007
        %1047 = vmatmul.f32.gmra.mxu0 %v1003
        %v1048 = vpop.f32.mrf.mxu0
        %v1049 = vadd.f32 0.0, %v1048
        %1050 = vdwg.mxu0
        %1051 = vmatpush.msra.mxu0 0.0
        %1052 = vmatpush.msra.mxu0 0.0
        %1053 = vmatpush.msra.mxu0 0.0
        %1054 = vmatpush.msra.mxu0 0.0
        %1055 = vmatpush.msra.mxu0 0.0
        %1056 = vmatpush.msra.mxu0 0.0
        %1057 = vmatpush.msra.mxu0 0.0
        %1058 = vmatpush.msra.mxu0 0.0
        %1059 = vmatpush.msra.mxu0 0.0
        %1060 = vmatpush.msra.mxu0 0.0
        %1061 = vmatpush.msra.mxu0 0.0
        %1062 = vmatpush.msra.mxu0 0.0
        %1063 = vmatpush.msra.mxu0 0.0
        %1064 = vmatpush.msra.mxu0 0.0
        %1065 = vmatpush.msra.mxu0 0.0
        %1066 = vmatpush.msra.mxu0 %v1009
        %1067 = vmatmul.f32.gmra.mxu0 %v1003
        %v1068 = vpop.f32.mrf.mxu0
        %v1069 = vadd.f32 0.0, %v1068
        %1070 = vdwg.mxu0
        %v1071 = vadd.f32 %v974, %v1029
        %v1072 = vadd.f32 %v975, %v1049
        %v1073 = vadd.f32 %v976, %v1069
        %v1074 = vsel %vm197, 1, 0
        %v1075 = vperm.slane %v1074, 0
        %v1076 = vperm.slane %v1074, 1
        %v1077 = vperm.slane %v1074, 2
        %vm1078 = vcmp.eq.s32.totalorder %v1075, 1
        %vm1079 = vcmp.eq.s32.totalorder %v1076, 1
        %vm1080 = vcmp.eq.s32.totalorder %v1077, 1
        %v1081 = vsel %vm1078, %v1071, 0.0
        %v1082 = vsel %vm1079, %v1072, 0.0
        %v1083 = vsel %vm1080, %v1073, 0.0
        %v1084 = vsel %vm240, %v1081, 0.0
        %v1085 = vsel %vm240, %v1082, 0.0
        %v1086 = vadd.f32 %v1084, %v1085
        %v1087 = vsel %vm240, %v1083, 0.0
        %v1088 = vadd.f32 %v1086, %v1087
        %1089 = vadd.xlane.f32.xlu0 %v1088
        %v1090 = vpop.xlane.xlu0 %1089
        %v1091 = vmul.f32 %v1090, 0.00390625
        %v1092 = vsub.f32 %v1071, %v1091
        %v1093 = vsub.f32 %v1072, %v1091
        %v1094 = vsub.f32 %v1073, %v1091
        %v1095 = vmul.f32 %v1092, %v1092
        %v1096 = vmul.f32 %v1093, %v1093
        %v1097 = vmul.f32 %v1094, %v1094
        %v1098 = vsel %vm1078, %v1095, 0.0
        %v1099 = vsel %vm1079, %v1096, 0.0
        %v1100 = vsel %vm1080, %v1097, 0.0
        %v1101 = vsel %vm240, %v1098, 0.0
        %v1102 = vsel %vm240, %v1099, 0.0
        %v1103 = vadd.f32 %v1101, %v1102
        %v1104 = vsel %vm240, %v1100, 0.0
        %v1105 = vadd.f32 %v1103, %v1104
        %1106 = vadd.xlane.f32.xlu0 %v1105
        %v1107 = vpop.xlane.xlu0 %1106
        %v1108 = vmul.f32 %v1107, 0.00390625
        %v1109 = vadd.f32 %v1108, 1e-05
        %v1110 = vrsqrt.pop %v1109
        %v1111 = vmul.f32 %v1110, %v1109
        %v1112 = vmul.f32 %v1111, %v1110
        %v1113 = vmul.f32 0.5, %v1112
        %v1114 = vsub.f32 1.5, %v1113
        %v1115 = vmul.f32 %v1110, %v1114
        %vm1116 = vweird.f32 %v1109
        %vm1117 = vweird.f32 %v1110
        %vm1118 = vmor %vm1116, %vm1117
        %v1119 = vsel %vm1118, %v1110, %v1115
        %v1120 = vmul.f32 %v1092, %v1119
        %v1121 = vmul.f32 %v1093, %v1119
        %v1122 = vmul.f32 %v1094, %v1119
        %v1123 = vmax.f32 %v1120, 0.0
        %v1124 = vmax.f32 %v1121, 0.0
        %v1125 = vmax.f32 %v1122, 0.0
        %1126 = vst [vmem:[#allocation2] sm:$0xff] 0.0
        %1127 = vst [vmem:[#allocation2 + $0x8] sm:$0xff] 0.0
        %v1131 = vrot.slane %v1124, 4
        %v1132 = vsel %vm240, %v1123, %v1131
        %1133 = vrot.lane.b32.xlu0 %v1132, 64
        %v1134 = vpop.permute.xlu0 %1133
        %1135 = vrot.lane.b32.xlu0 %v1125, 64
        %v1136 = vpop.permute.xlu0 %1135
        %v1137 = vrot.slane %v1134, 4
        %v1138 = vrot.slane %v1136, 4
        %v1139 = vsel %vm610, %v1137, %v1134
        %v1140 = vsel %vm240, %v1137, %v1138
        %v1141 = vsel %vm610, %v1140, %v1136
        %vm1144 = vcmask 1043968
        %vm1145 = vcmask 1047556
        %vm1146 = vmor %vm1145, %vm1144
        %1147 = vst.msk [vmem:[#allocation2] sm:$0xff] %vm1146, %v1139
        %vm1148 = vcmask 523268
        %vm1149 = vmor %vm1148, %vm240
        %1150 = vst.msk [vmem:[#allocation2 + $0x8] sm:$0xff] %vm1149, %v1141
        %v1151 = vld [vmem:[#allocation2] sm:$0xff]
        %v1152 = vld [vmem:[#allocation2 + $0x8] sm:$0xff]
        %v1153 = vsel %vm200, 1, 0
        %v1154 = vperm.slane %v1153, 0
        %v1155 = vperm.slane %v1153, 1
        %v1156 = vperm.slane %v1153, 2
        %vm1157 = vcmp.eq.s32.totalorder %v1154, 1
        %vm1158 = vcmp.eq.s32.totalorder %v1155, 1
        %vm1159 = vcmp.eq.s32.totalorder %v1156, 1
        %1162 = vst [vmem:[#allocation1] ss:$2 sm:$0xff] %v1151
        %s1163 = scalar_lea.vmem [#allocation1], 16
        %1164 = vst [vmem:[%s1163] ss:$2 sm:$0xff] %v1152
        %v1165 = vld.sshfl [vmem:[#allocation1] sm:$0xff pattern:$0x75316420]
        %v1166 = vld.sshfl [vmem:[#allocation1 + $0x8] sm:$0xff pattern:$0x75316420]
        %v1167 = vld.sshfl [vmem:[#allocation1 + $0x10] sm:$0xff pattern:$0x75316420]
        %v1168 = vld.sshfl [vmem:[#allocation1 + $0x18] sm:$0xff pattern:$0x75316420]
        %1169 = vrot.lane.b32.xlu0 %v1165, 62
        %v1170 = vpop.permute.xlu0 %1169
        %1171 = vrot.lane.b32.xlu0 %v1166, 62
        %v1172 = vpop.permute.xlu0 %1171
        %1173 = vrot.lane.b32.xlu0 %v1167, 62
        %v1174 = vpop.permute.xlu0 %1173
        %1175 = vrot.lane.b32.xlu0 %v1168, 62
        %v1176 = vpop.permute.xlu0 %1175
        %vm1177 = vcmask 506880
        %v1178 = vsel %vm1177, %v1170, %v1172
        %v1179 = vsel %vm1177, %v1172, %v1174
        %v1180 = vsel %vm1177, %v1174, %v1176
        %v1184 = vsel %vm1157, %v1178, %v1123
        %v1185 = vsel %vm1158, %v1179, %v1124
        %v1186 = vsel %vm1159, %v1180, %v1125
        %v1187 = vld [vmem:[#allocation2] sm:$0xff]
        %v1188 = vld [vmem:[#allocation2 + $0x8] sm:$0xff]
        %v1189 = vsel %vm203, 1, 0
        %v1190 = vperm.slane %v1189, 0
        %v1191 = vperm.slane %v1189, 1
        %v1192 = vperm.slane %v1189, 2
        %vm1193 = vcmp.eq.s32.totalorder %v1190, 1
        %vm1194 = vcmp.eq.s32.totalorder %v1191, 1
        %vm1195 = vcmp.eq.s32.totalorder %v1192, 1
        %1198 = vst [vmem:[#allocation1] ss:$2 sm:$0xff] %v1187
        %s1199 = scalar_lea.vmem [#allocation1], 16
        %1200 = vst [vmem:[%s1199] ss:$2 sm:$0xff] %v1188
        %v1201 = vld.sshfl [vmem:[#allocation1] sm:$0xff pattern:$0x75316420]
        %v1202 = vld.sshfl [vmem:[#allocation1 + $0x8] sm:$0xff pattern:$0x75316420]
        %v1203 = vld.sshfl [vmem:[#allocation1 + $0x10] sm:$0xff pattern:$0x75316420]
        %v1204 = vld.sshfl [vmem:[#allocation1 + $0x18] sm:$0xff pattern:$0x75316420]
        %1205 = vrot.lane.b32.xlu0 %v1201, 66
        %v1206 = vpop.permute.xlu0 %1205
        %1207 = vrot.lane.b32.xlu0 %v1202, 66
        %v1208 = vpop.permute.xlu0 %1207
        %1209 = vrot.lane.b32.xlu0 %v1203, 66
        %v1210 = vpop.permute.xlu0 %1209
        %1211 = vrot.lane.b32.xlu0 %v1204, 66
        %v1212 = vpop.permute.xlu0 %1211
        %vm1213 = vcmask 539648
        %v1214 = vsel %vm1213, %v1206, %v1208
        %v1215 = vsel %vm1213, %v1208, %v1210
        %v1216 = vsel %vm1213, %v1210, %v1212
        %v1220 = vsel %vm1193, %v1214, %v1184
        %v1221 = vsel %vm1194, %v1215, %v1185
        %v1222 = vsel %vm1195, %v1216, %v1186
        %v1226 = vrot.slane %v1221, 4
        %v1227 = vsel %vm240, %v1220, %v1226
        %1228 = vrot.lane.b32.xlu0 %v1227, 64
        %v1229 = vpop.permute.xlu0 %1228
        %1230 = vrot.lane.b32.xlu0 %v1222, 64
        %v1231 = vpop.permute.xlu0 %1230
        %v1232 = vrot.slane %v1229, 4
        %v1233 = vrot.slane %v1231, 4
        %v1234 = vsel %vm610, %v1232, %v1229
        %v1235 = vsel %vm240, %v1232, %v1233
        %v1236 = vsel %vm610, %v1235, %v1231
        %1239 = vst.msk [vmem:[#allocation2] sm:$0xff] %vm1146, %v1234
        %1240 = vst.msk [vmem:[#allocation2 + $0x8] sm:$0xff] %vm1149, %v1236
        %v1241 = vld [vmem:[#allocation2] sm:$0xff]
        %v1242 = vld [vmem:[#allocation2 + $0x8] sm:$0xff]
        %v1243 = vsel %vm206, 1, 0
        %v1244 = vperm.slane %v1243, 0
        %v1245 = vperm.slane %v1243, 1
        %v1246 = vperm.slane %v1243, 2
        %vm1247 = vcmp.eq.s32.totalorder %v1244, 1
        %vm1248 = vcmp.eq.s32.totalorder %v1245, 1
        %vm1249 = vcmp.eq.s32.totalorder %v1246, 1
        %1252 = vst [vmem:[#allocation1] ss:$2 sm:$0xff] %v1241
        %s1253 = scalar_lea.vmem [#allocation1], 16
        %1254 = vst [vmem:[%s1253] ss:$2 sm:$0xff] %v1242
        %v1255 = vld.sshfl [vmem:[#allocation1] sm:$0xff pattern:$0x75316420]
        %v1256 = vld.sshfl [vmem:[#allocation1 + $0x8] sm:$0xff pattern:$0x75316420]
        %v1257 = vld.sshfl [vmem:[#allocation1 + $0x10] sm:$0xff pattern:$0x75316420]
        %v1258 = vld.sshfl [vmem:[#allocation1 + $0x18] sm:$0xff pattern:$0x75316420]
        %1259 = vrot.lane.b32.xlu0 %v1255, 28
        %v1260 = vpop.permute.xlu0 %1259
        %1261 = vrot.lane.b32.xlu0 %v1256, 28
        %v1262 = vpop.permute.xlu0 %1261
        %1263 = vrot.lane.b32.xlu0 %v1257, 28
        %v1264 = vpop.permute.xlu0 %1263
        %1265 = vrot.lane.b32.xlu0 %v1258, 28
        %v1266 = vpop.permute.xlu0 %1265
        %vm1267 = vcmask 228352
        %v1268 = vsel %vm1267, %v1260, %v1262
        %v1269 = vsel %vm1267, %v1262, %v1264
        %v1270 = vsel %vm1267, %v1264, %v1266
        %v1274 = vsel %vm1247, %v1268, %v1220
        %v1275 = vsel %vm1248, %v1269, %v1221
        %v1276 = vsel %vm1249, %v1270, %v1222
        %v1277 = vld [vmem:[#allocation2] sm:$0xff]
        %v1278 = vld [vmem:[#allocation2 + $0x8] sm:$0xff]
        %v1279 = vsel %vm209, 1, 0
        %v1280 = vperm.slane %v1279, 0
        %v1281 = vperm.slane %v1279, 1
        %v1282 = vperm.slane %v1279, 2
        %vm1283 = vcmp.eq.s32.totalorder %v1280, 1
        %vm1284 = vcmp.eq.s32.totalorder %v1281, 1
        %vm1285 = vcmp.eq.s32.totalorder %v1282, 1
        %1288 = vst [vmem:[#allocation1] ss:$2 sm:$0xff] %v1277
        %s1289 = scalar_lea.vmem [#allocation1], 16
        %1290 = vst [vmem:[%s1289] ss:$2 sm:$0xff] %v1278
        %v1291 = vld.sshfl [vmem:[#allocation1] sm:$0xff pattern:$0x75316420]
        %v1292 = vld.sshfl [vmem:[#allocation1 + $0x8] sm:$0xff pattern:$0x75316420]
        %v1293 = vld.sshfl [vmem:[#allocation1 + $0x10] sm:$0xff pattern:$0x75316420]
        %v1294 = vld.sshfl [vmem:[#allocation1 + $0x18] sm:$0xff pattern:$0x75316420]
        %1295 = vrot.lane.b32.xlu0 %v1291, 100
        %v1296 = vpop.permute.xlu0 %1295
        %1297 = vrot.lane.b32.xlu0 %v1292, 100
        %v1298 = vpop.permute.xlu0 %1297
        %1299 = vrot.lane.b32.xlu0 %v1293, 100
        %v1300 = vpop.permute.xlu0 %1299
        %1301 = vrot.lane.b32.xlu0 %v1294, 100
        %v1302 = vpop.permute.xlu0 %1301
        %vm1303 = vcmask 818176
        %v1304 = vsel %vm1303, %v1296, %v1298
        %v1305 = vsel %vm1303, %v1298, %v1300
        %v1306 = vsel %vm1303, %v1300, %v1302
        %v1310 = vsel %vm1283, %v1304, %v1274
        %v1311 = vsel %vm1284, %v1305, %v1275
        %v1312 = vsel %vm1285, %v1306, %v1276
        %v1316 = vrot.slane %v1311, 4
        %v1317 = vsel %vm240, %v1310, %v1316
        %1318 = vrot.lane.b32.xlu0 %v1317, 64
        %v1319 = vpop.permute.xlu0 %1318
        %1320 = vrot.lane.b32.xlu0 %v1312, 64
        %v1321 = vpop.permute.xlu0 %1320
        %v1322 = vrot.slane %v1319, 4
        %v1323 = vrot.slane %v1321, 4
        %v1324 = vsel %vm610, %v1322, %v1319
        %v1325 = vsel %vm240, %v1322, %v1323
        %v1326 = vsel %vm610, %v1325, %v1321
        %1329 = vst.msk [vmem:[#allocation2] sm:$0xff] %vm1146, %v1324
        %1330 = vst.msk [vmem:[#allocation2 + $0x8] sm:$0xff] %vm1149, %v1326
        %v1331 = vld [vmem:[%s2] sm:$0xf]
        %v1332 = vld [vmem:[#allocation2] sm:$0xff]
        %v1333 = vld [vmem:[#allocation2 + $0x8] sm:$0xff]
        %s1334 = scalar_lea.vmem %s2, 4
        %v1335 = vld [vmem:[%s1334] sm:$0xf]
        %1338 = vst [vmem:[#allocation1] ss:$2 sm:$0xff] %v1332
        %s1339 = scalar_lea.vmem [#allocation1], 16
        %1340 = vst [vmem:[%s1339] ss:$2 sm:$0xff] %v1333
        %v1341 = vld.sshfl [vmem:[#allocation1] sm:$0xff pattern:$0x75316420]
        %v1342 = vld.sshfl [vmem:[#allocation1 + $0x8] sm:$0xff pattern:$0x75316420]
        %v1343 = vld.sshfl [vmem:[#allocation1 + $0x10] sm:$0xff pattern:$0x75316420]
        %v1344 = vld.sshfl [vmem:[#allocation1 + $0x18] sm:$0xff pattern:$0x75316420]
        %1345 = vrot.lane.b32.xlu0 %v1341, 82
        %v1346 = vpop.permute.xlu0 %1345
        %1347 = vrot.lane.b32.xlu0 %v1342, 82
        %v1348 = vpop.permute.xlu0 %1347
        %1349 = vrot.lane.b32.xlu0 %v1343, 82
        %v1350 = vpop.permute.xlu0 %1349
        %1351 = vrot.lane.b32.xlu0 %v1344, 82
        %v1352 = vpop.permute.xlu0 %1351
        %v1353 = vsel %vm232, %v1346, %v1348
        %v1354 = vsel %vm232, %v1348, %v1350
        %v1355 = vsel %vm232, %v1350, %v1352
        %v1357 = vsel %vm236, %v1335, 0
        %v1359 = vsel %vm240, %v1353, 0
        %v1361 = vsel %vm240, %v1354, 0
        %v1363 = vsel %vm240, %v1355, 0
        %1365 = vmatpush.msra.mxu0 0.0
        %1366 = vmatpush.msra.mxu0 0.0
        %1367 = vmatpush.msra.mxu0 0.0
        %1368 = vmatpush.msra.mxu0 0.0
        %1369 = vmatpush.msra.mxu0 0.0
        %1370 = vmatpush.msra.mxu0 0.0
        %1371 = vmatpush.msra.mxu0 0.0
        %1372 = vmatpush.msra.mxu0 0.0
        %1373 = vmatpush.msra.mxu0 0.0
        %1374 = vmatpush.msra.mxu0 0.0
        %1375 = vmatpush.msra.mxu0 0.0
        %1376 = vmatpush.msra.mxu0 0.0
        %1377 = vmatpush.msra.mxu0 0.0
        %1378 = vmatpush.msra.mxu0 0.0
        %1379 = vmatpush.msra.mxu0 0.0
        %1380 = vmatpush.msra.mxu0 %v1359
        %1381 = vmatmul.f32.gmra.mxu0 %v1357
        %v1382 = vpop.f32.mrf.mxu0
        %v1383 = vadd.f32 0.0, %v1382
        %1384 = vdwg.mxu0
        %1385 = vmatpush.msra.mxu0 0.0
        %1386 = vmatpush.msra.mxu0 0.0
        %1387 = vmatpush.msra.mxu0 0.0
        %1388 = vmatpush.msra.mxu0 0.0
        %1389 = vmatpush.msra.mxu0 0.0
        %1390 = vmatpush.msra.mxu0 0.0
        %1391 = vmatpush.msra.mxu0 0.0
        %1392 = vmatpush.msra.mxu0 0.0
        %1393 = vmatpush.msra.mxu0 0.0
        %1394 = vmatpush.msra.mxu0 0.0
        %1395 = vmatpush.msra.mxu0 0.0
        %1396 = vmatpush.msra.mxu0 0.0
        %1397 = vmatpush.msra.mxu0 0.0
        %1398 = vmatpush.msra.mxu0 0.0
        %1399 = vmatpush.msra.mxu0 0.0
        %1400 = vmatpush.msra.mxu0 %v1361
        %1401 = vmatmul.f32.gmra.mxu0 %v1357
        %v1402 = vpop.f32.mrf.mxu0
        %v1403 = vadd.f32 0.0, %v1402
        %1404 = vdwg.mxu0
        %1405 = vmatpush.msra.mxu0 0.0
        %1406 = vmatpush.msra.mxu0 0.0
        %1407 = vmatpush.msra.mxu0 0.0
        %1408 = vmatpush.msra.mxu0 0.0
        %1409 = vmatpush.msra.mxu0 0.0
        %1410 = vmatpush.msra.mxu0 0.0
        %1411 = vmatpush.msra.mxu0 0.0
        %1412 = vmatpush.msra.mxu0 0.0
        %1413 = vmatpush.msra.mxu0 0.0
        %1414 = vmatpush.msra.mxu0 0.0
        %1415 = vmatpush.msra.mxu0 0.0
        %1416 = vmatpush.msra.mxu0 0.0
        %1417 = vmatpush.msra.mxu0 0.0
        %1418 = vmatpush.msra.mxu0 0.0
        %1419 = vmatpush.msra.mxu0 0.0
        %1420 = vmatpush.msra.mxu0 %v1363
        %1421 = vmatmul.f32.gmra.mxu0 %v1357
        %v1422 = vpop.f32.mrf.mxu0
        %v1423 = vadd.f32 0.0, %v1422
        %1424 = vdwg.mxu0
        %1425 = vst [vmem:[#allocation1] ss:$2 sm:$0xff] %v1332
        %s1426 = scalar_lea.vmem [#allocation1], 16
        %1427 = vst [vmem:[%s1426] ss:$2 sm:$0xff] %v1333
        %v1428 = vld.sshfl [vmem:[#allocation1] sm:$0xff pattern:$0x75316420]
        %v1429 = vld.sshfl [vmem:[#allocation1 + $0x8] sm:$0xff pattern:$0x75316420]
        %v1430 = vld.sshfl [vmem:[#allocation1 + $0x10] sm:$0xff pattern:$0x75316420]
        %v1431 = vld.sshfl [vmem:[#allocation1 + $0x18] sm:$0xff pattern:$0x75316420]
        %1432 = vrot.lane.b32.xlu0 %v1428, 83
        %v1433 = vpop.permute.xlu0 %1432
        %1434 = vrot.lane.b32.xlu0 %v1429, 83
        %v1435 = vpop.permute.xlu0 %1434
        %1436 = vrot.lane.b32.xlu0 %v1430, 83
        %v1437 = vpop.permute.xlu0 %1436
        %1438 = vrot.lane.b32.xlu0 %v1431, 83
        %v1439 = vpop.permute.xlu0 %1438
        %v1440 = vsel %vm322, %v1433, %v1435
        %v1441 = vsel %vm322, %v1435, %v1437
        %v1442 = vsel %vm322, %v1437, %v1439
        %v1444 = vsel %vm236, %v1331, 0
        %v1446 = vsel %vm240, %v1440, 0
        %v1448 = vsel %vm240, %v1441, 0
        %v1450 = vsel %vm240, %v1442, 0
        %1452 = vmatpush.msra.mxu0 0.0
        %1453 = vmatpush.msra.mxu0 0.0
        %1454 = vmatpush.msra.mxu0 0.0
        %1455 = vmatpush.msra.mxu0 0.0
        %1456 = vmatpush.msra.mxu0 0.0
        %1457 = vmatpush.msra.mxu0 0.0
        %1458 = vmatpush.msra.mxu0 0.0
        %1459 = vmatpush.msra.mxu0 0.0
        %1460 = vmatpush.msra.mxu0 0.0
        %1461 = vmatpush.msra.mxu0 0.0
        %1462 = vmatpush.msra.mxu0 0.0
        %1463 = vmatpush.msra.mxu0 0.0
        %1464 = vmatpush.msra.mxu0 0.0
        %1465 = vmatpush.msra.mxu0 0.0
        %1466 = vmatpush.msra.mxu0 0.0
        %1467 = vmatpush.msra.mxu0 %v1446
        %1468 = vmatmul.f32.gmra.mxu0 %v1444
        %v1469 = vpop.f32.mrf.mxu0
        %v1470 = vadd.f32 %v1383, %v1469
        %1471 = vdwg.mxu0
        %1472 = vmatpush.msra.mxu0 0.0
        %1473 = vmatpush.msra.mxu0 0.0
        %1474 = vmatpush.msra.mxu0 0.0
        %1475 = vmatpush.msra.mxu0 0.0
        %1476 = vmatpush.msra.mxu0 0.0
        %1477 = vmatpush.msra.mxu0 0.0
        %1478 = vmatpush.msra.mxu0 0.0
        %1479 = vmatpush.msra.mxu0 0.0
        %1480 = vmatpush.msra.mxu0 0.0
        %1481 = vmatpush.msra.mxu0 0.0
        %1482 = vmatpush.msra.mxu0 0.0
        %1483 = vmatpush.msra.mxu0 0.0
        %1484 = vmatpush.msra.mxu0 0.0
        %1485 = vmatpush.msra.mxu0 0.0
        %1486 = vmatpush.msra.mxu0 0.0
        %1487 = vmatpush.msra.mxu0 %v1448
        %1488 = vmatmul.f32.gmra.mxu0 %v1444
        %v1489 = vpop.f32.mrf.mxu0
        %v1490 = vadd.f32 %v1403, %v1489
        %1491 = vdwg.mxu0
        %1492 = vmatpush.msra.mxu0 0.0
        %1493 = vmatpush.msra.mxu0 0.0
        %1494 = vmatpush.msra.mxu0 0.0
        %1495 = vmatpush.msra.mxu0 0.0
        %1496 = vmatpush.msra.mxu0 0.0
        %1497 = vmatpush.msra.mxu0 0.0
        %1498 = vmatpush.msra.mxu0 0.0
        %1499 = vmatpush.msra.mxu0 0.0
        %1500 = vmatpush.msra.mxu0 0.0
        %1501 = vmatpush.msra.mxu0 0.0
        %1502 = vmatpush.msra.mxu0 0.0
        %1503 = vmatpush.msra.mxu0 0.0
        %1504 = vmatpush.msra.mxu0 0.0
        %1505 = vmatpush.msra.mxu0 0.0
        %1506 = vmatpush.msra.mxu0 0.0
        %1507 = vmatpush.msra.mxu0 %v1450
        %1508 = vmatmul.f32.gmra.mxu0 %v1444
        %v1509 = vpop.f32.mrf.mxu0
        %v1510 = vadd.f32 %v1423, %v1509
        %1511 = vdwg.mxu0
        %s1512 = scalar_lea.vmem %s2, 8
        %v1513 = vld [vmem:[%s1512] sm:$0xf]
        %v1514 = vld [vmem:[#allocation2] sm:$0xff]
        %v1515 = vld [vmem:[#allocation2 + $0x8] sm:$0xff]
        %1518 = vst [vmem:[#allocation1] ss:$2 sm:$0xff] %v1514
        %s1519 = scalar_lea.vmem [#allocation1], 16
        %1520 = vst [vmem:[%s1519] ss:$2 sm:$0xff] %v1515
        %v1521 = vld.sshfl [vmem:[#allocation1] sm:$0xff pattern:$0x75316420]
        %v1522 = vld.sshfl [vmem:[#allocation1 + $0x8] sm:$0xff pattern:$0x75316420]
        %v1523 = vld.sshfl [vmem:[#allocation1 + $0x10] sm:$0xff pattern:$0x75316420]
        %v1524 = vld.sshfl [vmem:[#allocation1 + $0x18] sm:$0xff pattern:$0x75316420]
        %1525 = vrot.lane.b32.xlu0 %v1521, 81
        %v1526 = vpop.permute.xlu0 %1525
        %1527 = vrot.lane.b32.xlu0 %v1522, 81
        %v1528 = vpop.permute.xlu0 %1527
        %1529 = vrot.lane.b32.xlu0 %v1523, 81
        %v1530 = vpop.permute.xlu0 %1529
        %1531 = vrot.lane.b32.xlu0 %v1524, 81
        %v1532 = vpop.permute.xlu0 %1531
        %v1533 = vsel %vm416, %v1526, %v1528
        %v1534 = vsel %vm416, %v1528, %v1530
        %v1535 = vsel %vm416, %v1530, %v1532
        %v1537 = vsel %vm236, %v1513, 0
        %v1539 = vsel %vm240, %v1533, 0
        %v1541 = vsel %vm240, %v1534, 0
        %v1543 = vsel %vm240, %v1535, 0
        %1545 = vmatpush.msra.mxu0 0.0
        %1546 = vmatpush.msra.mxu0 0.0
        %1547 = vmatpush.msra.mxu0 0.0
        %1548 = vmatpush.msra.mxu0 0.0
        %1549 = vmatpush.msra.mxu0 0.0
        %1550 = vmatpush.msra.mxu0 0.0
        %1551 = vmatpush.msra.mxu0 0.0
        %1552 = vmatpush.msra.mxu0 0.0
        %1553 = vmatpush.msra.mxu0 0.0
        %1554 = vmatpush.msra.mxu0 0.0
        %1555 = vmatpush.msra.mxu0 0.0
        %1556 = vmatpush.msra.mxu0 0.0
        %1557 = vmatpush.msra.mxu0 0.0
        %1558 = vmatpush.msra.mxu0 0.0
        %1559 = vmatpush.msra.mxu0 0.0
        %1560 = vmatpush.msra.mxu0 %v1539
        %1561 = vmatmul.f32.gmra.mxu0 %v1537
        %v1562 = vpop.f32.mrf.mxu0
        %v1563 = vadd.f32 0.0, %v1562
        %1564 = vdwg.mxu0
        %1565 = vmatpush.msra.mxu0 0.0
        %1566 = vmatpush.msra.mxu0 0.0
        %1567 = vmatpush.msra.mxu0 0.0
        %1568 = vmatpush.msra.mxu0 0.0
        %1569 = vmatpush.msra.mxu0 0.0
        %1570 = vmatpush.msra.mxu0 0.0
        %1571 = vmatpush.msra.mxu0 0.0
        %1572 = vmatpush.msra.mxu0 0.0
        %1573 = vmatpush.msra.mxu0 0.0
        %1574 = vmatpush.msra.mxu0 0.0
        %1575 = vmatpush.msra.mxu0 0.0
        %1576 = vmatpush.msra.mxu0 0.0
        %1577 = vmatpush.msra.mxu0 0.0
        %1578 = vmatpush.msra.mxu0 0.0
        %1579 = vmatpush.msra.mxu0 0.0
        %1580 = vmatpush.msra.mxu0 %v1541
        %1581 = vmatmul.f32.gmra.mxu0 %v1537
        %v1582 = vpop.f32.mrf.mxu0
        %v1583 = vadd.f32 0.0, %v1582
        %1584 = vdwg.mxu0
        %1585 = vmatpush.msra.mxu0 0.0
        %1586 = vmatpush.msra.mxu0 0.0
        %1587 = vmatpush.msra.mxu0 0.0
        %1588 = vmatpush.msra.mxu0 0.0
        %1589 = vmatpush.msra.mxu0 0.0
        %1590 = vmatpush.msra.mxu0 0.0
        %1591 = vmatpush.msra.mxu0 0.0
        %1592 = vmatpush.msra.mxu0 0.0
        %1593 = vmatpush.msra.mxu0 0.0
        %1594 = vmatpush.msra.mxu0 0.0
        %1595 = vmatpush.msra.mxu0 0.0
        %1596 = vmatpush.msra.mxu0 0.0
        %1597 = vmatpush.msra.mxu0 0.0
        %1598 = vmatpush.msra.mxu0 0.0
        %1599 = vmatpush.msra.mxu0 0.0
        %1600 = vmatpush.msra.mxu0 %v1543
        %1601 = vmatmul.f32.gmra.mxu0 %v1537
        %v1602 = vpop.f32.mrf.mxu0
        %v1603 = vadd.f32 0.0, %v1602
        %1604 = vdwg.mxu0
        %v1605 = vadd.f32 %v1470, %v1563
        %v1606 = vadd.f32 %v1490, %v1583
        %v1607 = vadd.f32 %v1510, %v1603
        %s1608 = scalar_lea.vmem %s2, 12
        %v1609 = vld [vmem:[%s1608] sm:$0xf]
        %v1610 = vld [vmem:[#allocation2] sm:$0xff]
        %v1611 = vld [vmem:[#allocation2 + $0x8] sm:$0xff]
        %1614 = vst [vmem:[#allocation1] ss:$2 sm:$0xff] %v1610
        %s1615 = scalar_lea.vmem [#allocation1], 16
        %1616 = vst [vmem:[%s1615] ss:$2 sm:$0xff] %v1611
        %v1617 = vld.sshfl [vmem:[#allocation1] sm:$0xff pattern:$0x75316420]
        %v1618 = vld.sshfl [vmem:[#allocation1 + $0x8] sm:$0xff pattern:$0x75316420]
        %v1619 = vld.sshfl [vmem:[#allocation1 + $0x10] sm:$0xff pattern:$0x75316420]
        %v1620 = vld.sshfl [vmem:[#allocation1 + $0x18] sm:$0xff pattern:$0x75316420]
        %1621 = vrot.lane.b32.xlu0 %v1617, 65
        %v1622 = vpop.permute.xlu0 %1621
        %1623 = vrot.lane.b32.xlu0 %v1618, 65
        %v1624 = vpop.permute.xlu0 %1623
        %1625 = vrot.lane.b32.xlu0 %v1619, 65
        %v1626 = vpop.permute.xlu0 %1625
        %1627 = vrot.lane.b32.xlu0 %v1620, 65
        %v1628 = vpop.permute.xlu0 %1627
        %v1629 = vsel %vm513, %v1622, %v1624
        %v1630 = vsel %vm513, %v1624, %v1626
        %v1631 = vsel %vm513, %v1626, %v1628
        %v1633 = vsel %vm236, %v1609, 0
        %v1635 = vsel %vm240, %v1629, 0
        %v1637 = vsel %vm240, %v1630, 0
        %v1639 = vsel %vm240, %v1631, 0
        %1641 = vmatpush.msra.mxu0 0.0
        %1642 = vmatpush.msra.mxu0 0.0
        %1643 = vmatpush.msra.mxu0 0.0
        %1644 = vmatpush.msra.mxu0 0.0
        %1645 = vmatpush.msra.mxu0 0.0
        %1646 = vmatpush.msra.mxu0 0.0
        %1647 = vmatpush.msra.mxu0 0.0
        %1648 = vmatpush.msra.mxu0 0.0
        %1649 = vmatpush.msra.mxu0 0.0
        %1650 = vmatpush.msra.mxu0 0.0
        %1651 = vmatpush.msra.mxu0 0.0
        %1652 = vmatpush.msra.mxu0 0.0
        %1653 = vmatpush.msra.mxu0 0.0
        %1654 = vmatpush.msra.mxu0 0.0
        %1655 = vmatpush.msra.mxu0 0.0
        %1656 = vmatpush.msra.mxu0 %v1635
        %1657 = vmatmul.f32.gmra.mxu0 %v1633
        %v1658 = vpop.f32.mrf.mxu0
        %v1659 = vadd.f32 0.0, %v1658
        %1660 = vdwg.mxu0
        %1661 = vmatpush.msra.mxu0 0.0
        %1662 = vmatpush.msra.mxu0 0.0
        %1663 = vmatpush.msra.mxu0 0.0
        %1664 = vmatpush.msra.mxu0 0.0
        %1665 = vmatpush.msra.mxu0 0.0
        %1666 = vmatpush.msra.mxu0 0.0
        %1667 = vmatpush.msra.mxu0 0.0
        %1668 = vmatpush.msra.mxu0 0.0
        %1669 = vmatpush.msra.mxu0 0.0
        %1670 = vmatpush.msra.mxu0 0.0
        %1671 = vmatpush.msra.mxu0 0.0
        %1672 = vmatpush.msra.mxu0 0.0
        %1673 = vmatpush.msra.mxu0 0.0
        %1674 = vmatpush.msra.mxu0 0.0
        %1675 = vmatpush.msra.mxu0 0.0
        %1676 = vmatpush.msra.mxu0 %v1637
        %1677 = vmatmul.f32.gmra.mxu0 %v1633
        %v1678 = vpop.f32.mrf.mxu0
        %v1679 = vadd.f32 0.0, %v1678
        %1680 = vdwg.mxu0
        %1681 = vmatpush.msra.mxu0 0.0
        %1682 = vmatpush.msra.mxu0 0.0
        %1683 = vmatpush.msra.mxu0 0.0
        %1684 = vmatpush.msra.mxu0 0.0
        %1685 = vmatpush.msra.mxu0 0.0
        %1686 = vmatpush.msra.mxu0 0.0
        %1687 = vmatpush.msra.mxu0 0.0
        %1688 = vmatpush.msra.mxu0 0.0
        %1689 = vmatpush.msra.mxu0 0.0
        %1690 = vmatpush.msra.mxu0 0.0
        %1691 = vmatpush.msra.mxu0 0.0
        %1692 = vmatpush.msra.mxu0 0.0
        %1693 = vmatpush.msra.mxu0 0.0
        %1694 = vmatpush.msra.mxu0 0.0
        %1695 = vmatpush.msra.mxu0 0.0
        %1696 = vmatpush.msra.mxu0 %v1639
        %1697 = vmatmul.f32.gmra.mxu0 %v1633
        %v1698 = vpop.f32.mrf.mxu0
        %v1699 = vadd.f32 0.0, %v1698
        %1700 = vdwg.mxu0
        %v1701 = vadd.f32 %v1605, %v1659
        %v1702 = vadd.f32 %v1606, %v1679
        %v1703 = vadd.f32 %v1607, %v1699
        %s1704 = scalar_lea.vmem %s2, 16
        %v1705 = vld [vmem:[%s1704] sm:$0xf]
        %v1706 = vld [vmem:[#allocation2] sm:$0xff]
        %v1707 = vld [vmem:[#allocation2 + $0x8] sm:$0xff]
        %1710 = vst [vmem:[#allocation1] ss:$2 sm:$0xff] %v1706
        %s1711 = scalar_lea.vmem [#allocation1], 16
        %1712 = vst [vmem:[%s1711] ss:$2 sm:$0xff] %v1707
        %v1713 = vld.sshfl [vmem:[#allocation1] sm:$0xff pattern:$0x75316420]
        %v1714 = vld.sshfl [vmem:[#allocation1 + $0x8] sm:$0xff pattern:$0x75316420]
        %v1715 = vld.sshfl [vmem:[#allocation1 + $0x10] sm:$0xff pattern:$0x75316420]
        %v1716 = vld.sshfl [vmem:[#allocation1 + $0x18] sm:$0xff pattern:$0x75316420]
        %1717 = vrot.lane.b32.xlu0 %v1713, 64
        %v1718 = vpop.permute.xlu0 %1717
        %1719 = vrot.lane.b32.xlu0 %v1714, 64
        %v1720 = vpop.permute.xlu0 %1719
        %1721 = vrot.lane.b32.xlu0 %v1715, 64
        %v1722 = vpop.permute.xlu0 %1721
        %1723 = vrot.lane.b32.xlu0 %v1716, 64
        %v1724 = vpop.permute.xlu0 %1723
        %v1725 = vsel %vm610, %v1718, %v1720
        %v1726 = vsel %vm610, %v1720, %v1722
        %v1727 = vsel %vm610, %v1722, %v1724
        %v1729 = vsel %vm236, %v1705, 0
        %v1731 = vsel %vm240, %v1725, 0
        %v1733 = vsel %vm240, %v1726, 0
        %v1735 = vsel %vm240, %v1727, 0
        %1737 = vmatpush.msra.mxu0 0.0
        %1738 = vmatpush.msra.mxu0 0.0
        %1739 = vmatpush.msra.mxu0 0.0
        %1740 = vmatpush.msra.mxu0 0.0
        %1741 = vmatpush.msra.mxu0 0.0
        %1742 = vmatpush.msra.mxu0 0.0
        %1743 = vmatpush.msra.mxu0 0.0
        %1744 = vmatpush.msra.mxu0 0.0
        %1745 = vmatpush.msra.mxu0 0.0
        %1746 = vmatpush.msra.mxu0 0.0
        %1747 = vmatpush.msra.mxu0 0.0
        %1748 = vmatpush.msra.mxu0 0.0
        %1749 = vmatpush.msra.mxu0 0.0
        %1750 = vmatpush.msra.mxu0 0.0
        %1751 = vmatpush.msra.mxu0 0.0
        %1752 = vmatpush.msra.mxu0 %v1731
        %1753 = vmatmul.f32.gmra.mxu0 %v1729
        %v1754 = vpop.f32.mrf.mxu0
        %v1755 = vadd.f32 0.0, %v1754
        %1756 = vdwg.mxu0
        %1757 = vmatpush.msra.mxu0 0.0
        %1758 = vmatpush.msra.mxu0 0.0
        %1759 = vmatpush.msra.mxu0 0.0
        %1760 = vmatpush.msra.mxu0 0.0
        %1761 = vmatpush.msra.mxu0 0.0
        %1762 = vmatpush.msra.mxu0 0.0
        %1763 = vmatpush.msra.mxu0 0.0
        %1764 = vmatpush.msra.mxu0 0.0
        %1765 = vmatpush.msra.mxu0 0.0
        %1766 = vmatpush.msra.mxu0 0.0
        %1767 = vmatpush.msra.mxu0 0.0
        %1768 = vmatpush.msra.mxu0 0.0
        %1769 = vmatpush.msra.mxu0 0.0
        %1770 = vmatpush.msra.mxu0 0.0
        %1771 = vmatpush.msra.mxu0 0.0
        %1772 = vmatpush.msra.mxu0 %v1733
        %1773 = vmatmul.f32.gmra.mxu0 %v1729
        %v1774 = vpop.f32.mrf.mxu0
        %v1775 = vadd.f32 0.0, %v1774
        %1776 = vdwg.mxu0
        %1777 = vmatpush.msra.mxu0 0.0
        %1778 = vmatpush.msra.mxu0 0.0
        %1779 = vmatpush.msra.mxu0 0.0
        %1780 = vmatpush.msra.mxu0 0.0
        %1781 = vmatpush.msra.mxu0 0.0
        %1782 = vmatpush.msra.mxu0 0.0
        %1783 = vmatpush.msra.mxu0 0.0
        %1784 = vmatpush.msra.mxu0 0.0
        %1785 = vmatpush.msra.mxu0 0.0
        %1786 = vmatpush.msra.mxu0 0.0
        %1787 = vmatpush.msra.mxu0 0.0
        %1788 = vmatpush.msra.mxu0 0.0
        %1789 = vmatpush.msra.mxu0 0.0
        %1790 = vmatpush.msra.mxu0 0.0
        %1791 = vmatpush.msra.mxu0 0.0
        %1792 = vmatpush.msra.mxu0 %v1735
        %1793 = vmatmul.f32.gmra.mxu0 %v1729
        %v1794 = vpop.f32.mrf.mxu0
        %v1795 = vadd.f32 0.0, %v1794
        %1796 = vdwg.mxu0
        %v1797 = vadd.f32 %v1701, %v1755
        %v1798 = vadd.f32 %v1702, %v1775
        %v1799 = vadd.f32 %v1703, %v1795
        %s1800 = scalar_lea.vmem %s2, 20
        %v1801 = vld [vmem:[%s1800] sm:$0xf]
        %v1802 = vld [vmem:[#allocation2] sm:$0xff]
        %v1803 = vld [vmem:[#allocation2 + $0x8] sm:$0xff]
        %1806 = vst [vmem:[#allocation1] ss:$2 sm:$0xff] %v1802
        %s1807 = scalar_lea.vmem [#allocation1], 16
        %1808 = vst [vmem:[%s1807] ss:$2 sm:$0xff] %v1803
        %v1809 = vld.sshfl [vmem:[#allocation1] sm:$0xff pattern:$0x75316420]
        %v1810 = vld.sshfl [vmem:[#allocation1 + $0x8] sm:$0xff pattern:$0x75316420]
        %v1811 = vld.sshfl [vmem:[#allocation1 + $0x10] sm:$0xff pattern:$0x75316420]
        %v1812 = vld.sshfl [vmem:[#allocation1 + $0x18] sm:$0xff pattern:$0x75316420]
        %1813 = vrot.lane.b32.xlu0 %v1809, 63
        %v1814 = vpop.permute.xlu0 %1813
        %1815 = vrot.lane.b32.xlu0 %v1810, 63
        %v1816 = vpop.permute.xlu0 %1815
        %1817 = vrot.lane.b32.xlu0 %v1811, 63
        %v1818 = vpop.permute.xlu0 %1817
        %1819 = vrot.lane.b32.xlu0 %v1812, 63
        %v1820 = vpop.permute.xlu0 %1819
        %v1821 = vsel %vm707, %v1814, %v1816
        %v1822 = vsel %vm707, %v1816, %v1818
        %v1823 = vsel %vm707, %v1818, %v1820
        %v1825 = vsel %vm236, %v1801, 0
        %v1827 = vsel %vm240, %v1821, 0
        %v1829 = vsel %vm240, %v1822, 0
        %v1831 = vsel %vm240, %v1823, 0
        %1833 = vmatpush.msra.mxu0 0.0
        %1834 = vmatpush.msra.mxu0 0.0
        %1835 = vmatpush.msra.mxu0 0.0
        %1836 = vmatpush.msra.mxu0 0.0
        %1837 = vmatpush.msra.mxu0 0.0
        %1838 = vmatpush.msra.mxu0 0.0
        %1839 = vmatpush.msra.mxu0 0.0
        %1840 = vmatpush.msra.mxu0 0.0
        %1841 = vmatpush.msra.mxu0 0.0
        %1842 = vmatpush.msra.mxu0 0.0
        %1843 = vmatpush.msra.mxu0 0.0
        %1844 = vmatpush.msra.mxu0 0.0
        %1845 = vmatpush.msra.mxu0 0.0
        %1846 = vmatpush.msra.mxu0 0.0
        %1847 = vmatpush.msra.mxu0 0.0
        %1848 = vmatpush.msra.mxu0 %v1827
        %1849 = vmatmul.f32.gmra.mxu0 %v1825
        %v1850 = vpop.f32.mrf.mxu0
        %v1851 = vadd.f32 0.0, %v1850
        %1852 = vdwg.mxu0
        %1853 = vmatpush.msra.mxu0 0.0
        %1854 = vmatpush.msra.mxu0 0.0
        %1855 = vmatpush.msra.mxu0 0.0
        %1856 = vmatpush.msra.mxu0 0.0
        %1857 = vmatpush.msra.mxu0 0.0
        %1858 = vmatpush.msra.mxu0 0.0
        %1859 = vmatpush.msra.mxu0 0.0
        %1860 = vmatpush.msra.mxu0 0.0
        %1861 = vmatpush.msra.mxu0 0.0
        %1862 = vmatpush.msra.mxu0 0.0
        %1863 = vmatpush.msra.mxu0 0.0
        %1864 = vmatpush.msra.mxu0 0.0
        %1865 = vmatpush.msra.mxu0 0.0
        %1866 = vmatpush.msra.mxu0 0.0
        %1867 = vmatpush.msra.mxu0 0.0
        %1868 = vmatpush.msra.mxu0 %v1829
        %1869 = vmatmul.f32.gmra.mxu0 %v1825
        %v1870 = vpop.f32.mrf.mxu0
        %v1871 = vadd.f32 0.0, %v1870
        %1872 = vdwg.mxu0
        %1873 = vmatpush.msra.mxu0 0.0
        %1874 = vmatpush.msra.mxu0 0.0
        %1875 = vmatpush.msra.mxu0 0.0
        %1876 = vmatpush.msra.mxu0 0.0
        %1877 = vmatpush.msra.mxu0 0.0
        %1878 = vmatpush.msra.mxu0 0.0
        %1879 = vmatpush.msra.mxu0 0.0
        %1880 = vmatpush.msra.mxu0 0.0
        %1881 = vmatpush.msra.mxu0 0.0
        %1882 = vmatpush.msra.mxu0 0.0
        %1883 = vmatpush.msra.mxu0 0.0
        %1884 = vmatpush.msra.mxu0 0.0
        %1885 = vmatpush.msra.mxu0 0.0
        %1886 = vmatpush.msra.mxu0 0.0
        %1887 = vmatpush.msra.mxu0 0.0
        %1888 = vmatpush.msra.mxu0 %v1831
        %1889 = vmatmul.f32.gmra.mxu0 %v1825
        %v1890 = vpop.f32.mrf.mxu0
        %v1891 = vadd.f32 0.0, %v1890
        %1892 = vdwg.mxu0
        %v1893 = vadd.f32 %v1797, %v1851
        %v1894 = vadd.f32 %v1798, %v1871
        %v1895 = vadd.f32 %v1799, %v1891
        %s1896 = scalar_lea.vmem %s2, 24
        %v1897 = vld [vmem:[%s1896] sm:$0xf]
        %v1898 = vld [vmem:[#allocation2] sm:$0xff]
        %v1899 = vld [vmem:[#allocation2 + $0x8] sm:$0xff]
        %1902 = vst [vmem:[#allocation1] ss:$2 sm:$0xff] %v1898
        %s1903 = scalar_lea.vmem [#allocation1], 16
        %1904 = vst [vmem:[%s1903] ss:$2 sm:$0xff] %v1899
        %v1905 = vld.sshfl [vmem:[#allocation1] sm:$0xff pattern:$0x75316420]
        %v1906 = vld.sshfl [vmem:[#allocation1 + $0x8] sm:$0xff pattern:$0x75316420]
        %v1907 = vld.sshfl [vmem:[#allocation1 + $0x10] sm:$0xff pattern:$0x75316420]
        %v1908 = vld.sshfl [vmem:[#allocation1 + $0x18] sm:$0xff pattern:$0x75316420]
        %1909 = vrot.lane.b32.xlu0 %v1905, 47
        %v1910 = vpop.permute.xlu0 %1909
        %1911 = vrot.lane.b32.xlu0 %v1906, 47
        %v1912 = vpop.permute.xlu0 %1911
        %1913 = vrot.lane.b32.xlu0 %v1907, 47
        %v1914 = vpop.permute.xlu0 %1913
        %1915 = vrot.lane.b32.xlu0 %v1908, 47
        %v1916 = vpop.permute.xlu0 %1915
        %v1917 = vsel %vm804, %v1910, %v1912
        %v1918 = vsel %vm804, %v1912, %v1914
        %v1919 = vsel %vm804, %v1914, %v1916
        %v1921 = vsel %vm236, %v1897, 0
        %v1923 = vsel %vm240, %v1917, 0
        %v1925 = vsel %vm240, %v1918, 0
        %v1927 = vsel %vm240, %v1919, 0
        %1929 = vmatpush.msra.mxu0 0.0
        %1930 = vmatpush.msra.mxu0 0.0
        %1931 = vmatpush.msra.mxu0 0.0
        %1932 = vmatpush.msra.mxu0 0.0
        %1933 = vmatpush.msra.mxu0 0.0
        %1934 = vmatpush.msra.mxu0 0.0
        %1935 = vmatpush.msra.mxu0 0.0
        %1936 = vmatpush.msra.mxu0 0.0
        %1937 = vmatpush.msra.mxu0 0.0
        %1938 = vmatpush.msra.mxu0 0.0
        %1939 = vmatpush.msra.mxu0 0.0
        %1940 = vmatpush.msra.mxu0 0.0
        %1941 = vmatpush.msra.mxu0 0.0
        %1942 = vmatpush.msra.mxu0 0.0
        %1943 = vmatpush.msra.mxu0 0.0
        %1944 = vmatpush.msra.mxu0 %v1923
        %1945 = vmatmul.f32.gmra.mxu0 %v1921
        %v1946 = vpop.f32.mrf.mxu0
        %v1947 = vadd.f32 0.0, %v1946
        %1948 = vdwg.mxu0
        %1949 = vmatpush.msra.mxu0 0.0
        %1950 = vmatpush.msra.mxu0 0.0
        %1951 = vmatpush.msra.mxu0 0.0
        %1952 = vmatpush.msra.mxu0 0.0
        %1953 = vmatpush.msra.mxu0 0.0
        %1954 = vmatpush.msra.mxu0 0.0
        %1955 = vmatpush.msra.mxu0 0.0
        %1956 = vmatpush.msra.mxu0 0.0
        %1957 = vmatpush.msra.mxu0 0.0
        %1958 = vmatpush.msra.mxu0 0.0
        %1959 = vmatpush.msra.mxu0 0.0
        %1960 = vmatpush.msra.mxu0 0.0
        %1961 = vmatpush.msra.mxu0 0.0
        %1962 = vmatpush.msra.mxu0 0.0
        %1963 = vmatpush.msra.mxu0 0.0
        %1964 = vmatpush.msra.mxu0 %v1925
        %1965 = vmatmul.f32.gmra.mxu0 %v1921
        %v1966 = vpop.f32.mrf.mxu0
        %v1967 = vadd.f32 0.0, %v1966
        %1968 = vdwg.mxu0
        %1969 = vmatpush.msra.mxu0 0.0
        %1970 = vmatpush.msra.mxu0 0.0
        %1971 = vmatpush.msra.mxu0 0.0
        %1972 = vmatpush.msra.mxu0 0.0
        %1973 = vmatpush.msra.mxu0 0.0
        %1974 = vmatpush.msra.mxu0 0.0
        %1975 = vmatpush.msra.mxu0 0.0
        %1976 = vmatpush.msra.mxu0 0.0
        %1977 = vmatpush.msra.mxu0 0.0
        %1978 = vmatpush.msra.mxu0 0.0
        %1979 = vmatpush.msra.mxu0 0.0
        %1980 = vmatpush.msra.mxu0 0.0
        %1981 = vmatpush.msra.mxu0 0.0
        %1982 = vmatpush.msra.mxu0 0.0
        %1983 = vmatpush.msra.mxu0 0.0
        %1984 = vmatpush.msra.mxu0 %v1927
        %1985 = vmatmul.f32.gmra.mxu0 %v1921
        %v1986 = vpop.f32.mrf.mxu0
        %v1987 = vadd.f32 0.0, %v1986
        %1988 = vdwg.mxu0
        %v1989 = vadd.f32 %v1893, %v1947
        %v1990 = vadd.f32 %v1894, %v1967
        %v1991 = vadd.f32 %v1895, %v1987
        %s1992 = scalar_lea.vmem %s2, 28
        %v1993 = vld [vmem:[%s1992] sm:$0xf]
        %v1994 = vld [vmem:[#allocation2] sm:$0xff]
        %v1995 = vld [vmem:[#allocation2 + $0x8] sm:$0xff]
        %1998 = vst [vmem:[#allocation1] ss:$2 sm:$0xff] %v1994
        %s1999 = scalar_lea.vmem [#allocation1], 16
        %2000 = vst [vmem:[%s1999] ss:$2 sm:$0xff] %v1995
        %v2001 = vld.sshfl [vmem:[#allocation1] sm:$0xff pattern:$0x75316420]
        %v2002 = vld.sshfl [vmem:[#allocation1 + $0x8] sm:$0xff pattern:$0x75316420]
        %v2003 = vld.sshfl [vmem:[#allocation1 + $0x10] sm:$0xff pattern:$0x75316420]
        %v2004 = vld.sshfl [vmem:[#allocation1 + $0x18] sm:$0xff pattern:$0x75316420]
        %2005 = vrot.lane.b32.xlu0 %v2001, 46
        %v2006 = vpop.permute.xlu0 %2005
        %2007 = vrot.lane.b32.xlu0 %v2002, 46
        %v2008 = vpop.permute.xlu0 %2007
        %2009 = vrot.lane.b32.xlu0 %v2003, 46
        %v2010 = vpop.permute.xlu0 %2009
        %2011 = vrot.lane.b32.xlu0 %v2004, 46
        %v2012 = vpop.permute.xlu0 %2011
        %v2013 = vsel %vm901, %v2006, %v2008
        %v2014 = vsel %vm901, %v2008, %v2010
        %v2015 = vsel %vm901, %v2010, %v2012
        %v2017 = vsel %vm236, %v1993, 0
        %v2019 = vsel %vm240, %v2013, 0
        %v2021 = vsel %vm240, %v2014, 0
        %v2023 = vsel %vm240, %v2015, 0
        %2025 = vmatpush.msra.mxu0 0.0
        %2026 = vmatpush.msra.mxu0 0.0
        %2027 = vmatpush.msra.mxu0 0.0
        %2028 = vmatpush.msra.mxu0 0.0
        %2029 = vmatpush.msra.mxu0 0.0
        %2030 = vmatpush.msra.mxu0 0.0
        %2031 = vmatpush.msra.mxu0 0.0
        %2032 = vmatpush.msra.mxu0 0.0
        %2033 = vmatpush.msra.mxu0 0.0
        %2034 = vmatpush.msra.mxu0 0.0
        %2035 = vmatpush.msra.mxu0 0.0
        %2036 = vmatpush.msra.mxu0 0.0
        %2037 = vmatpush.msra.mxu0 0.0
        %2038 = vmatpush.msra.mxu0 0.0
        %2039 = vmatpush.msra.mxu0 0.0
        %2040 = vmatpush.msra.mxu0 %v2019
        %2041 = vmatmul.f32.gmra.mxu0 %v2017
        %v2042 = vpop.f32.mrf.mxu0
        %v2043 = vadd.f32 0.0, %v2042
        %2044 = vdwg.mxu0
        %2045 = vmatpush.msra.mxu0 0.0
        %2046 = vmatpush.msra.mxu0 0.0
        %2047 = vmatpush.msra.mxu0 0.0
        %2048 = vmatpush.msra.mxu0 0.0
        %2049 = vmatpush.msra.mxu0 0.0
        %2050 = vmatpush.msra.mxu0 0.0
        %2051 = vmatpush.msra.mxu0 0.0
        %2052 = vmatpush.msra.mxu0 0.0
        %2053 = vmatpush.msra.mxu0 0.0
        %2054 = vmatpush.msra.mxu0 0.0
        %2055 = vmatpush.msra.mxu0 0.0
        %2056 = vmatpush.msra.mxu0 0.0
        %2057 = vmatpush.msra.mxu0 0.0
        %2058 = vmatpush.msra.mxu0 0.0
        %2059 = vmatpush.msra.mxu0 0.0
        %2060 = vmatpush.msra.mxu0 %v2021
        %2061 = vmatmul.f32.gmra.mxu0 %v2017
        %v2062 = vpop.f32.mrf.mxu0
        %v2063 = vadd.f32 0.0, %v2062
        %2064 = vdwg.mxu0
        %2065 = vmatpush.msra.mxu0 0.0
        %2066 = vmatpush.msra.mxu0 0.0
        %2067 = vmatpush.msra.mxu0 0.0
        %2068 = vmatpush.msra.mxu0 0.0
        %2069 = vmatpush.msra.mxu0 0.0
        %2070 = vmatpush.msra.mxu0 0.0
        %2071 = vmatpush.msra.mxu0 0.0
        %2072 = vmatpush.msra.mxu0 0.0
        %2073 = vmatpush.msra.mxu0 0.0
        %2074 = vmatpush.msra.mxu0 0.0
        %2075 = vmatpush.msra.mxu0 0.0
        %2076 = vmatpush.msra.mxu0 0.0
        %2077 = vmatpush.msra.mxu0 0.0
        %2078 = vmatpush.msra.mxu0 0.0
        %2079 = vmatpush.msra.mxu0 0.0
        %2080 = vmatpush.msra.mxu0 %v2023
        %2081 = vmatmul.f32.gmra.mxu0 %v2017
        %v2082 = vpop.f32.mrf.mxu0
        %v2083 = vadd.f32 0.0, %v2082
        %2084 = vdwg.mxu0
        %v2085 = vadd.f32 %v1989, %v2043
        %v2086 = vadd.f32 %v1990, %v2063
        %v2087 = vadd.f32 %v1991, %v2083
        %s2088 = scalar_lea.vmem %s2, 32
        %v2089 = vld [vmem:[%s2088] sm:$0xf]
        %v2090 = vld [vmem:[#allocation2] sm:$0xff]
        %v2091 = vld [vmem:[#allocation2 + $0x8] sm:$0xff]
        %2094 = vst [vmem:[#allocation1] ss:$2 sm:$0xff] %v2090
        %s2095 = scalar_lea.vmem [#allocation1], 16
        %2096 = vst [vmem:[%s2095] ss:$2 sm:$0xff] %v2091
        %v2097 = vld.sshfl [vmem:[#allocation1] sm:$0xff pattern:$0x75316420]
        %v2098 = vld.sshfl [vmem:[#allocation1 + $0x8] sm:$0xff pattern:$0x75316420]
        %v2099 = vld.sshfl [vmem:[#allocation1 + $0x10] sm:$0xff pattern:$0x75316420]
        %v2100 = vld.sshfl [vmem:[#allocation1 + $0x18] sm:$0xff pattern:$0x75316420]
        %2101 = vrot.lane.b32.xlu0 %v2097, 45
        %v2102 = vpop.permute.xlu0 %2101
        %2103 = vrot.lane.b32.xlu0 %v2098, 45
        %v2104 = vpop.permute.xlu0 %2103
        %2105 = vrot.lane.b32.xlu0 %v2099, 45
        %v2106 = vpop.permute.xlu0 %2105
        %2107 = vrot.lane.b32.xlu0 %v2100, 45
        %v2108 = vpop.permute.xlu0 %2107
        %v2109 = vsel %vm998, %v2102, %v2104
        %v2110 = vsel %vm998, %v2104, %v2106
        %v2111 = vsel %vm998, %v2106, %v2108
        %v2113 = vsel %vm236, %v2089, 0
        %v2115 = vsel %vm240, %v2109, 0
        %v2117 = vsel %vm240, %v2110, 0
        %v2119 = vsel %vm240, %v2111, 0
        %2121 = vmatpush.msra.mxu0 0.0
        %2122 = vmatpush.msra.mxu0 0.0
        %2123 = vmatpush.msra.mxu0 0.0
        %2124 = vmatpush.msra.mxu0 0.0
        %2125 = vmatpush.msra.mxu0 0.0
        %2126 = vmatpush.msra.mxu0 0.0
        %2127 = vmatpush.msra.mxu0 0.0
        %2128 = vmatpush.msra.mxu0 0.0
        %2129 = vmatpush.msra.mxu0 0.0
        %2130 = vmatpush.msra.mxu0 0.0
        %2131 = vmatpush.msra.mxu0 0.0
        %2132 = vmatpush.msra.mxu0 0.0
        %2133 = vmatpush.msra.mxu0 0.0
        %2134 = vmatpush.msra.mxu0 0.0
        %2135 = vmatpush.msra.mxu0 0.0
        %2136 = vmatpush.msra.mxu0 %v2115
        %2137 = vmatmul.f32.gmra.mxu0 %v2113
        %v2138 = vpop.f32.mrf.mxu0
        %v2139 = vadd.f32 0.0, %v2138
        %2140 = vdwg.mxu0
        %2141 = vmatpush.msra.mxu0 0.0
        %2142 = vmatpush.msra.mxu0 0.0
        %2143 = vmatpush.msra.mxu0 0.0
        %2144 = vmatpush.msra.mxu0 0.0
        %2145 = vmatpush.msra.mxu0 0.0
        %2146 = vmatpush.msra.mxu0 0.0
        %2147 = vmatpush.msra.mxu0 0.0
        %2148 = vmatpush.msra.mxu0 0.0
        %2149 = vmatpush.msra.mxu0 0.0
        %2150 = vmatpush.msra.mxu0 0.0
        %2151 = vmatpush.msra.mxu0 0.0
        %2152 = vmatpush.msra.mxu0 0.0
        %2153 = vmatpush.msra.mxu0 0.0
        %2154 = vmatpush.msra.mxu0 0.0
        %2155 = vmatpush.msra.mxu0 0.0
        %2156 = vmatpush.msra.mxu0 %v2117
        %2157 = vmatmul.f32.gmra.mxu0 %v2113
        %v2158 = vpop.f32.mrf.mxu0
        %v2159 = vadd.f32 0.0, %v2158
        %2160 = vdwg.mxu0
        %2161 = vmatpush.msra.mxu0 0.0
        %2162 = vmatpush.msra.mxu0 0.0
        %2163 = vmatpush.msra.mxu0 0.0
        %2164 = vmatpush.msra.mxu0 0.0
        %2165 = vmatpush.msra.mxu0 0.0
        %2166 = vmatpush.msra.mxu0 0.0
        %2167 = vmatpush.msra.mxu0 0.0
        %2168 = vmatpush.msra.mxu0 0.0
        %2169 = vmatpush.msra.mxu0 0.0
        %2170 = vmatpush.msra.mxu0 0.0
        %2171 = vmatpush.msra.mxu0 0.0
        %2172 = vmatpush.msra.mxu0 0.0
        %2173 = vmatpush.msra.mxu0 0.0
        %2174 = vmatpush.msra.mxu0 0.0
        %2175 = vmatpush.msra.mxu0 0.0
        %2176 = vmatpush.msra.mxu0 %v2119
        %2177 = vmatmul.f32.gmra.mxu0 %v2113
        %v2178 = vpop.f32.mrf.mxu0
        %v2179 = vadd.f32 0.0, %v2178
        %2180 = vdwg.mxu0
        %v2181 = vadd.f32 %v2085, %v2139
        %v2182 = vadd.f32 %v2086, %v2159
        %v2183 = vadd.f32 %v2087, %v2179
        %v2184 = vsel %vm1078, %v2181, 0.0
        %v2185 = vsel %vm1079, %v2182, 0.0
        %v2186 = vsel %vm1080, %v2183, 0.0
        %v2187 = vsel %vm240, %v2184, 0.0
        %v2188 = vsel %vm240, %v2185, 0.0
        %v2189 = vadd.f32 %v2187, %v2188
        %v2190 = vsel %vm240, %v2186, 0.0
        %v2191 = vadd.f32 %v2189, %v2190
        %2192 = vadd.xlane.f32.xlu0 %v2191
        %v2193 = vpop.xlane.xlu0 %2192
        %v2194 = vmul.f32 %v2193, 0.00390625
        %v2195 = vsub.f32 %v2181, %v2194
        %v2196 = vsub.f32 %v2182, %v2194
        %v2197 = vsub.f32 %v2183, %v2194
        %v2198 = vmul.f32 %v2195, %v2195
        %v2199 = vmul.f32 %v2196, %v2196
        %v2200 = vmul.f32 %v2197, %v2197
        %v2201 = vsel %vm1078, %v2198, 0.0
        %v2202 = vsel %vm1079, %v2199, 0.0
        %v2203 = vsel %vm1080, %v2200, 0.0
        %v2204 = vsel %vm240, %v2201, 0.0
        %v2205 = vsel %vm240, %v2202, 0.0
        %v2206 = vadd.f32 %v2204, %v2205
        %v2207 = vsel %vm240, %v2203, 0.0
        %v2208 = vadd.f32 %v2206, %v2207
        %2209 = vadd.xlane.f32.xlu0 %v2208
        %v2210 = vpop.xlane.xlu0 %2209
        %v2211 = vmul.f32 %v2210, 0.00390625
        %v2212 = vadd.f32 %v2211, 1e-05
        %v2213 = vrsqrt.pop %v2212
        %v2214 = vmul.f32 %v2213, %v2212
        %v2215 = vmul.f32 %v2214, %v2213
        %v2216 = vmul.f32 0.5, %v2215
        %v2217 = vsub.f32 1.5, %v2216
        %v2218 = vmul.f32 %v2213, %v2217
        %vm2219 = vweird.f32 %v2212
        %vm2220 = vweird.f32 %v2213
        %vm2221 = vmor %vm2219, %vm2220
        %v2222 = vsel %vm2221, %v2213, %v2218
        %v2223 = vmul.f32 %v2195, %v2222
        %v2224 = vmul.f32 %v2196, %v2222
        %v2225 = vmul.f32 %v2197, %v2222
        %v2226 = vld [vmem:[%s195] sm:$0xff]
        %v2227 = vld [vmem:[%s195 + $0x8] sm:$0xff]
        %2230 = vst [vmem:[#allocation1] ss:$2 sm:$0xff] %v2226
        %s2231 = scalar_lea.vmem [#allocation1], 16
        %2232 = vst [vmem:[%s2231] ss:$2 sm:$0xff] %v2227
        %v2233 = vld.sshfl [vmem:[#allocation1] sm:$0xff pattern:$0x75316420]
        %v2234 = vld.sshfl [vmem:[#allocation1 + $0x8] sm:$0xff pattern:$0x75316420]
        %v2235 = vld.sshfl [vmem:[#allocation1 + $0x10] sm:$0xff pattern:$0x75316420]
        %v2236 = vld.sshfl [vmem:[#allocation1 + $0x18] sm:$0xff pattern:$0x75316420]
        %2237 = vrot.lane.b32.xlu0 %v2233, 64
        %v2238 = vpop.permute.xlu0 %2237
        %2239 = vrot.lane.b32.xlu0 %v2234, 64
        %v2240 = vpop.permute.xlu0 %2239
        %2241 = vrot.lane.b32.xlu0 %v2235, 64
        %v2242 = vpop.permute.xlu0 %2241
        %2243 = vrot.lane.b32.xlu0 %v2236, 64
        %v2244 = vpop.permute.xlu0 %2243
        %v2245 = vsel %vm610, %v2238, %v2240
        %v2246 = vsel %vm610, %v2240, %v2242
        %v2247 = vsel %vm610, %v2242, %v2244
        %v2251 = vadd.f32 %v2223, %v2245
        %v2252 = vadd.f32 %v2224, %v2246
        %v2253 = vadd.f32 %v2225, %v2247
        %v2256 = vrot.slane %v2252, 4
        %v2257 = vsel %vm240, %v2251, %v2256
        %2259 = vst [vmem:[%s190] sm:$0xff] %v2257
        %2260 = vst [vmem:[%s190 + $0x8] sm:$0xf] %v2253
        %s2261 = sand.u32 %s115, 1
        %s2262 = scalar_lea.sflag [#allocation4], %s2261
        %s2263 = sand.u32 %s115, 1
        %s2264 = smul.addr %s2263, 12
        %s2265 = scalar_lea.vmem [#allocation3], %s2264
        // Predicated region
        $region37: #{tpu_custom_call.1} parent=35 // pred_check
          %p2266 = pneg %p125
        $region38: #{tpu_custom_call.1} parent=35 // pred_check_branch
          %2268 = sbr.rel (%p2266) target = $region40
        $region39: #{tpu_custom_call.1} parent=35 // pred_region
          %2270 = vsyncadd %s2262, 0
          %s2271 = smul.addr %s18, 3
          %s2272 = smul.addr %s2271, 4
          %s2273 = scalar_lea.hbm %s4, %s2272
          %s2275 = sshll.u32 %s2265, 4
          %s2276 = int_to_ptr.vmem [resolvable:$true] %s2275
          %s2277 = sshll.u32 %s2273, 4
          %s2278 = int_to_ptr.hbm [resolvable:$true] %s2277
          %2280 = dma.vmem_to_hbm [thread:$0]  %s2276, 192, %s2278, %s2262
        $region40: #{tpu_custom_call.1} parent=35 // pred_fallthru
          _
      $region36: #{tpu_custom_call.1} parent=5 // pred_fallthru
        _
      %p2281 = scmp.le.s32.totalorder 2, %s13
      // Predicated region
      $region41: #{tpu_custom_call.1} parent=5 // pred_check
        %p2282 = pneg %p2281
      $region42: #{tpu_custom_call.1} parent=5 // pred_check_branch
        %2284 = sbr.rel (%p2282) target = $region44
      $region43: #{tpu_custom_call.1} parent=5 // pred_region
        %s2285 = ssub.s32 %s13, 2
        // Predicated region
        $region45: #{tpu_custom_call.1} parent=43 // pred_check
          %p2286 = pneg %p131
        $region46: #{tpu_custom_call.1} parent=43 // pred_check_branch
          %2288 = sbr.rel (%p2286) target = $region48
        $region47: #{tpu_custom_call.1} parent=43 // pred_region
          %s2289 = sand.u32 %s116, 1
          %s2290 = scalar_lea.sflag [#allocation4], %s2289
          %s2291 = sand.u32 %s116, 1
          %s2292 = smul.addr %s2291, 12
          %s2293 = scalar_lea.vmem [#allocation3], %s2292
          %2295 = dma.done %s2290, 192
        $region48: #{tpu_custom_call.1} parent=43 // pred_fallthru
          _
      $region44: #{tpu_custom_call.1} parent=5 // pred_fallthru
        _
    $region6: #{tpu_custom_call.1} parent=1 // loop_footer
      %s17 = sadd.s32 1, %s13
    $region7: #{tpu_custom_call.1} parent=1 // loop_footer_branch
      %12 = sbr.rel target = $region3
    $region8: #{tpu_custom_call.1} parent=1 // loop_exit
      _
    %2296 = vsyncpa [#allocation4], 1
    %s2297 = scalar_lea.sflag [#allocation4], 1
    %2298 = vsyncpa %s2297, 1

</llo_original>
